<compile_context>
chip_gen: v5e
topology: v5e:2x2
jax: 0.10.0
libtpu: 0.0.40
codegen_flags: <defaults>
</compile_context>

<pallas_src>
from functools import partial

import jax
import jax.numpy as jnp
from jax import lax
from jax.experimental import pallas as pl
from jax.experimental.pallas import tpu as pltpu


_LANE = 128

_FIND_KEYS = ('w_wv', 'b_wv', 'w_img', 'b_img', 'w_att', 'b_att')
_TRANS_KEYS = ('w_wv', 'b_wv', 'w_img', 'b_img', 'w_ai', 'b_ai', 'w_out', 'b_out')
_DESC_KEYS = ('w_wv_t', 'b_wv', 'w_ai_t', 'b_ai', 'w_ans_t', 'b_ans')
_LSTM_KEYS = ('w_ih_p', 'w_hh_p', 'b_p')


# ----------------------------------------------------------------------------
# Fused layout kernel (built per static layout program)
# ----------------------------------------------------------------------------

def _make_layout_kernel(prog, h_dim):
    """Builds one Pallas kernel that evaluates the whole layout tree in VMEM."""

    def kernel(wvs_ref, img_ref, xs_ref,
               f_wwv, f_bwv, f_wimg, f_bimg, f_watt, f_batt,
               t_wwv, t_bwv, t_wimg, t_bimg, t_wai, t_bai, t_wout, t_bout,
               d_wwvt, d_bwv, d_wait, d_bai, d_wanst, d_bans,
               l_wihp, l_whhp, l_bp,
               out_ref):
        img = img_ref[...]                                    # (D_img, S) — C on sublanes, S on lanes
        S = img.shape[1]

        def wv_col(w_ref, b_ref, k):
            # (Dmap, 1) = W (Dmap, D_txt) @ wordvec_k^T   (MXU trans-B matmul, no XLU transpose)
            wv_row = wvs_ref[k:k + 1, :]                      # (1, D_txt)
            return lax.dot_general(
                w_ref[...], wv_row, (((1,), (1,)), ((), ())),
                preferred_element_type=jnp.float32) + b_ref[...]

        def l2norm_cols(ew):
            # F.normalize(p=2, dim=channel): channel axis == sublanes here.
            norm = jnp.sqrt(jnp.sum(ew * ew, axis=0, keepdims=True))     # (1, S)
            return ew / jnp.maximum(norm, 1e-12)

        def find(k):
            wv_m = wv_col(f_wwv, f_bwv, k)                                # (Dmap, 1)
            img_m = jnp.dot(f_wimg[...], img,
                            preferred_element_type=jnp.float32) + f_bimg[...]   # (Dmap, S)
            ewn = l2norm_cols(img_m * wv_m)
            return jnp.dot(f_watt[...], ewn,
                           preferred_element_type=jnp.float32) + f_batt[...]    # (1, S) lane-dense

        def transform(k, sub_att):
            # Softmax2d over a single-channel grid is identically 1 -> the
            # attended feature equals the raw image; sub_att is mathematically
            # unused (faithful to the PyTorch reference).
            # TODO(synk): generalize if attention grids ever carry >1 channel.
            del sub_att
            wv_m = wv_col(t_wwv, t_bwv, k)                                # (Dmap, 1)
            img_m = jnp.dot(t_wimg[...], img,
                            preferred_element_type=jnp.float32) + t_bimg[...]   # (Dmap, S)
            img_prob = jnp.sum(img, axis=1, keepdims=True)                # (D_img, 1)
            att_feat = jnp.dot(t_wai[...], img_prob,
                               preferred_element_type=jnp.float32) + t_bai[...]  # (Dmap, 1)
            ewn = l2norm_cols((att_feat * wv_m) * img_m)
            return jnp.dot(t_wout[...], ewn,
                           preferred_element_type=jnp.float32) + t_bout[...]    # (1, S)

        def lstm_hidden():
            HP = l_whhp.shape[0]
            seq = xs_ref.shape[0]
            # Input projection hoisted out of the recurrence; bias already fused.
            x_proj = jnp.dot(xs_ref[...], l_wihp[...],
                             preferred_element_type=jnp.float32) + l_bp[...]    # (seq, 4*HP)
            whh = l_whhp[...]
            h = jnp.zeros((1, HP), jnp.float32)
            c = jnp.zeros((1, HP), jnp.float32)
            for t in range(seq):                               # fully unrolled recurrence
                gates = (jnp.dot(h, whh, preferred_element_type=jnp.float32)
                         + x_proj[t:t + 1, :])                 # (1, 4*HP)
                sig = jax.nn.sigmoid(gates)                    # one EUP pass, full gate vector
                th = jnp.tanh(gates)                           # one EUP pass, full gate vector
                # 128-lane-aligned gate extraction (whole vregs, no cross-lane selects).
                i_g = sig[:, 0 * HP:1 * HP]
                f_g = sig[:, 1 * HP:2 * HP]
                g_g = th[:, 2 * HP:3 * HP]
                o_g = sig[:, 3 * HP:4 * HP]
                c = f_g * c + i_g * g_g
                h = o_g * jnp.tanh(c)
            return h[:, :h_dim]                                # (1, H); padded lanes stay exactly 0

        def describe(k, sub_att):
            del sub_att  # single-channel Softmax2d == 1 (see transform)
            wv_row = wvs_ref[k:k + 1, :]                       # (1, D_txt)
            wv_m = jnp.dot(wv_row, d_wwvt[...],
                           preferred_element_type=jnp.float32) + d_bwv[...]     # (1, Dmap)
            ones_s = jnp.ones((1, S), jnp.float32)
            # (1, D_img) spatial sum via trans-B MXU matmul (row form, no transpose).
            img_prob = lax.dot_general(ones_s, img, (((1,), (1,)), ((), ())),
                                       preferred_element_type=jnp.float32)      # (1, D_img)
            att_feat = jnp.dot(img_prob, d_wait[...],
                               preferred_element_type=jnp.float32) + d_bai[...]  # (1, Dmap)
            h = lstm_hidden()                                  # (1, H) — requires H == Dmap
            ew = att_feat * wv_m * h                           # (1, Dmap)
            norm = jnp.sqrt(jnp.sum(ew * ew, axis=1, keepdims=True))
            ewn = ew / jnp.maximum(norm, 1e-12)
            return jnp.dot(ewn, d_wanst[...],
                           preferred_element_type=jnp.float32) + d_bans[...]    # (1, D_ans)

        def run(node):
            kind = node[0]
            if kind == 'find':
                return find(node[1])
            if kind == 'transform':
                return transform(node[1], run(node[2]))
            if kind == 'describe':
                return describe(node[1], run(node[2]))
            if kind == 'and':
                return jnp.minimum(run(node[1]), run(node[2]))
            raise ValueError(f"unknown program node: {kind}")

        out_ref[...] = run(prog).astype(out_ref.dtype)

    return kernel


# ----------------------------------------------------------------------------
# Jitted wrapper: host-side gathers/reshapes fuse with the single pallas_call
# ----------------------------------------------------------------------------

@partial(jax.jit, static_argnums=(0, 1))
def _fused_layout_forward(prog, h_dim, prep, label_ids, image_feat, token_ids):
    C, Hh, Ww = image_feat.shape[1], image_feat.shape[2], image_feat.shape[3]
    S = Hh * Ww
    img = image_feat.astype(jnp.float32).reshape(C, S)          # (C, S) slab, built once
    wvs = prep['module_emb'][label_ids]                         # (N_nodes, D_txt)
    xs = prep['q_emb'][token_ids.reshape(-1)]                   # (seq, D_txt) gather outside kernel

    root_is_describe = prog[0] == 'describe'
    D_ans = prep['describe']['w_ans_t'].shape[1]
    out_shape = (1, D_ans) if root_is_describe else (1, S)

    args = (wvs, img, xs,
            *(prep['find'][k] for k in _FIND_KEYS),
            *(prep['transform'][k] for k in _TRANS_KEYS),
            *(prep['describe'][k] for k in _DESC_KEYS),
            *(prep['lstm'][k] for k in _LSTM_KEYS))

    out = pl.pallas_call(
        _make_layout_kernel(prog, h_dim),
        out_shape=jax.ShapeDtypeStruct(out_shape, jnp.float32),
        in_specs=[pl.BlockSpec(memory_space=pltpu.MemorySpace.VMEM)] * len(args),
        out_specs=pl.BlockSpec(memory_space=pltpu.MemorySpace.VMEM),
    )(*args)

    if root_is_describe:
        return out                                              # (1, D_ans)
    return out.reshape(1, 1, Hh, Ww)                            # attention grid, NCHW


# ----------------------------------------------------------------------------
# One-time parameter preparation (transposes / column biases / LSTM gate padding)
# ----------------------------------------------------------------------------

def prepare_params(p):
    f32 = jnp.float32

    def col(b):
        return jnp.asarray(b, f32).reshape(-1, 1)

    def row(b):
        return jnp.asarray(b, f32).reshape(1, -1)

    f = p['find']
    find = dict(
        w_wv=jnp.asarray(f['w_wv'], f32), b_wv=col(f['b_wv']),
        w_img=jnp.asarray(f['w_img'], f32), b_img=col(f['b_img']),
        w_att=jnp.asarray(f['w_att'], f32),
        b_att=jnp.asarray(f['b_att'], f32).reshape(1, 1),
    )
    t = p['transform']
    transform = dict(
        w_wv=jnp.asarray(t['w_wv'], f32), b_wv=col(t['b_wv']),
        w_img=jnp.asarray(t['w_img'], f32), b_img=col(t['b_img']),
        w_ai=jnp.asarray(t['w_att_img'], f32), b_ai=col(t['b_att_img']),
        w_out=jnp.asarray(t['w_out'], f32),
        b_out=jnp.asarray(t['b_out'], f32).reshape(1, 1),
    )
    d = p['describe']
    describe = dict(                                   # row-layout head (mixes with LSTM h row)
        w_wv_t=jnp.asarray(d['w_wv'], f32).T, b_wv=row(d['b_wv']),
        w_ai_t=jnp.asarray(d['w_att_img'], f32).T, b_ai=row(d['b_att_img']),
        w_ans_t=jnp.asarray(d['w_ans'], f32).T, b_ans=row(d['b_ans']),
    )

    l = p['lstm']
    H = l['w_hh'].shape[1]
    HP = ((H + _LANE - 1) // _LANE) * _LANE
    D_txt = l['w_ih'].shape[1]
    w_ih_t = jnp.asarray(l['w_ih'], f32).T             # (D_txt, 4H), gate order [i|f|g|o]
    w_hh_t = jnp.asarray(l['w_hh'], f32).T             # (H, 4H)
    b_fused = jnp.asarray(l['b_ih'], f32) + jnp.asarray(l['b_hh'], f32)   # (4H,)
    # Pad each gate to its own 128-lane group; padded lanes of h/c stay exactly 0.
    w_ih_p = jnp.zeros((D_txt, 4 * HP), f32)
    w_hh_p = jnp.zeros((HP, 4 * HP), f32)
    b_p = jnp.zeros((1, 4 * HP), f32)
    for g in range(4):
        w_ih_p = w_ih_p.at[:, g * HP:g * HP + H].set(w_ih_t[:, g * H:(g + 1) * H])
        w_hh_p = w_hh_p.at[:H, g * HP:g * HP + H].set(w_hh_t[:, g * H:(g + 1) * H])
        b_p = b_p.at[0, g * HP:g * HP + H].set(b_fused[g * H:(g + 1) * H])
    lstm = dict(w_ih_p=w_ih_p, w_hh_p=w_hh_p, b_p=b_p)

    return dict(module_emb=jnp.asarray(p['module_emb'], f32),
                q_emb=jnp.asarray(p['q_emb'], f32),
                find=find, transform=transform, describe=describe, lstm=lstm)


# ----------------------------------------------------------------------------
# Host-side layout dispatch (mirrors the torch forward's Python recursion)
# ----------------------------------------------------------------------------

class ModuleVocab:
    def __init__(self, word_list):
        self.word_list = list(word_list)
        self._w2i = {w: i for i, w in enumerate(self.word_list)}

    def word2idx(self, word):
        return self._w2i[word]


def _flatten_layout(layout, vocab, labels):
    """Turns the dynamic layout tree into (static program, list of label ids)."""
    def resolve(label):
        if label not in vocab.word_list:
            label = '<unk>'
        return vocab.word2idx(label)

    if layout[0] == 'Find':
        idx = len(labels)
        labels.append(resolve(layout[1]))
        return ('find', idx)
    (root_type, root_label), subtree = layout
    if root_type == 'Describe':
        idx = len(labels)
        labels.append(resolve(root_label))
        return ('describe', idx, _flatten_layout(subtree, vocab, labels))
    if root_type == 'Transform':
        idx = len(labels)
        labels.append(resolve(root_label))
        return ('transform', idx, _flatten_layout(subtree, vocab, labels))
    if root_type == 'And':
        a = _flatten_layout(subtree[0], vocab, labels)
        b = _flatten_layout(subtree[1], vocab, labels)
        return ('and', a, b)
    raise ValueError(f"unknown layout node: {root_type}")


class DynamicModularNetPallas:
    def __init__(self, params):
        self.prep = prepare_params(params)
        self.h_dim = int(params['lstm']['w_hh'].shape[1])

    def forward(self, layout, image_feat, token_seq, vocab):
        labels = []
        prog = _flatten_layout(layout, vocab, labels)          # static program (jit cache key)
        label_ids = jnp.asarray(labels, dtype=jnp.int32)       # traced data (labels can change)
        return _fused_layout_forward(prog, self.h_dim, self.prep, label_ids,
                                     image_feat, token_seq)


# ----------------------------------------------------------------------------
# Pure-JAX reference (mirrors the PyTorch module)
# ----------------------------------------------------------------------------

def _mm(a, b):
    return jnp.dot(a, b, precision=jax.lax.Precision.HIGHEST)


def lstm_encoder_ref(p, q_emb, token_ids):
    H = p['w_hh'].shape[1]
    xs = q_emb[token_ids.reshape(-1)]

    def step(carry, x):
        h, c = carry
        gates = (_mm(x[None, :], p['w_ih'].T)[0] + p['b_ih']
                 + _mm(h[None, :], p['w_hh'].T)[0] + p['b_hh'])
        i, f, g, o = jnp.split(gates, 4)
        i = jax.nn.sigmoid(i); f = jax.nn.sigmoid(f)
        g = jnp.tanh(g); o = jax.nn.sigmoid(o)
        c = f * c + i * g
        h = o * jnp.tanh(c)
        return (h, c), None

    (h, _c), _ = lax.scan(step, (jnp.zeros(H), jnp.zeros(H)), xs)
    return h.reshape(1, H)


def find_ref(p, wordvec, image_feat):
    _, C, Hh, Ww = image_feat.shape
    S = Hh * Ww
    wv_mapped = _mm(wordvec[None, :], p['w_wv'].T)[0] + p['b_wv']
    img = image_feat.reshape(C, S)
    img_mapped = _mm(p['w_img'], img) + p['b_img'][:, None]
    ew = img_mapped * wv_mapped[:, None]
    norm = jnp.sqrt(jnp.sum(ew * ew, axis=0, keepdims=True))
    ewn = ew / jnp.maximum(norm, 1e-12)
    att = _mm(p['w_att'], ewn) + p['b_att'][:, None]
    return att.reshape(1, 1, Hh, Ww)


def transform_ref(p, att_grid, wordvec, image_feat):
    _, C, Hh, Ww = image_feat.shape
    S = Hh * Ww
    wv_mapped = _mm(wordvec[None, :], p['w_wv'].T)[0] + p['b_wv']
    img = image_feat.reshape(C, S)
    img_mapped = _mm(p['w_img'], img) + p['b_img'][:, None]
    att_sm = jax.nn.softmax(att_grid.reshape(1, S), axis=0)      # Softmax2d, C=1 -> ones
    attended = att_sm * img
    img_prob = attended.sum(axis=1)
    att_feat = _mm(img_prob[None, :], p['w_att_img'].T)[0] + p['b_att_img']
    ew = (att_feat * wv_mapped)[:, None] * img_mapped
    norm = jnp.sqrt(jnp.sum(ew * ew, axis=0, keepdims=True))
    ewn = ew / jnp.maximum(norm, 1e-12)
    out = _mm(p['w_out'], ewn) + p['b_out'][:, None]
    return out.reshape(1, 1, Hh, Ww)


def describe_ref(p, att_grid, wordvec, image_feat, hidden):
    _, C, Hh, Ww = image_feat.shape
    S = Hh * Ww
    wv_mapped = _mm(wordvec[None, :], p['w_wv'].T) + p['b_wv'][None, :]
    img = image_feat.reshape(C, S)
    att_sm = jax.nn.softmax(att_grid.reshape(1, S), axis=0)      # Softmax2d, C=1 -> ones
    attended = att_sm * img
    img_prob = attended.sum(axis=1)[None, :]
    att_feat = _mm(img_prob, p['w_att_img'].T) + p['b_att_img'][None, :]
    ew = att_feat * wv_mapped * hidden
    norm = jnp.sqrt(jnp.sum(ew * ew, axis=1, keepdims=True))
    ewn = ew / jnp.maximum(norm, 1e-12)
    return _mm(ewn, p['w_ans'].T) + p['b_ans'][None, :]


def dmn_forward_ref(params, layout, image_feat, token_seq, vocab):
    def label_vec(label):
        if label not in vocab.word_list:
            label = '<unk>'
        return params['module_emb'][vocab.word2idx(label)]

    if layout[0] == 'Find':
        return find_ref(params['find'], label_vec(layout[1]), image_feat)
    (root_type, root_label), subtree = layout
    if root_type == 'Describe':
        sub = dmn_forward_ref(params, subtree, image_feat, token_seq, vocab)
        hidden = lstm_encoder_ref(params['lstm'], params['q_emb'], token_seq)
        return describe_ref(params['describe'], sub, label_vec(root_label),
                            image_feat, hidden)
    if root_type == 'Transform':
        sub = dmn_forward_ref(params, subtree, image_feat, token_seq, vocab)
        return transform_ref(params['transform'], sub, label_vec(root_label),
                             image_feat)
    if root_type == 'And':
        kids = [dmn_forward_ref(params, s, image_feat, token_seq, vocab)
                for s in subtree]
        return jnp.minimum(kids[0], kids[1])
    raise ValueError(root_type)


# ----------------------------------------------------------------------------
# Parameter construction
# ----------------------------------------------------------------------------

def _linear_init(key, out_dim, in_dim):
    kw, kb = jax.random.split(key)
    bound = 1.0 / (in_dim ** 0.5)
    w = jax.random.uniform(kw, (out_dim, in_dim), jnp.float32, -bound, bound)
    b = jax.random.uniform(kb, (out_dim,), jnp.float32, -bound, bound)
    return w, b


def init_params(key, *, D_img, D_txt, D_map, D_hid, D_ans, q_vocab, m_vocab):
    ks = jax.random.split(key, 16)
    bound = 1.0 / (D_hid ** 0.5)
    p = {
        'module_emb': jax.random.normal(ks[0], (m_vocab, D_txt), jnp.float32),
        'q_emb': jax.random.normal(ks[1], (q_vocab, D_txt), jnp.float32),
        'lstm': dict(
            w_ih=jax.random.uniform(ks[2], (4 * D_hid, D_txt), jnp.float32, -bound, bound),
            w_hh=jax.random.uniform(ks[3], (4 * D_hid, D_hid), jnp.float32, -bound, bound),
            b_ih=jax.random.uniform(ks[4], (4 * D_hid,), jnp.float32, -bound, bound),
            b_hh=jax.random.uniform(ks[5], (4 * D_hid,), jnp.float32, -bound, bound),
        ),
    }
    w_wv, b_wv = _linear_init(ks[6], D_map, D_txt)
    w_img, b_img = _linear_init(ks[7], D_map, D_img)
    w_att, b_att = _linear_init(ks[8], 1, D_map)
    p['find'] = dict(w_wv=w_wv, b_wv=b_wv, w_img=w_img, b_img=b_img,
                     w_att=w_att, b_att=b_att)

    w_wv, b_wv = _linear_init(ks[9], D_map, D_txt)
    w_ai, b_ai = _linear_init(ks[10], D_map, D_img)
    w_img, b_img = _linear_init(ks[11], D_map, D_img)
    w_out, b_out = _linear_init(ks[12], 1, D_map)
    p['transform'] = dict(w_wv=w_wv, b_wv=b_wv, w_att_img=w_ai, b_att_img=b_ai,
                          w_img=w_img, b_img=b_img, w_out=w_out, b_out=b_out)

    w_wv, b_wv = _linear_init(ks[13], D_map, D_txt)
    w_ai, b_ai = _linear_init(ks[14], D_map, D_img)
    w_ans, b_ans = _linear_init(ks[15], D_ans, D_map)
    p['describe'] = dict(w_wv=w_wv, b_wv=b_wv, w_att_img=w_ai, b_att_img=b_ai,
                         w_ans=w_ans, b_ans=b_ans)
    return p


# ----------------------------------------------------------------------------
# Main
# ----------------------------------------------------------------------------

if __name__ == "__main__":
    D_img, D_txt, D_map, D_hid, D_ans = 16, 32, 32, 32, 8
    Hh = Ww = 8
    q_vocab, m_vocab, seq = 50, 12, 8

    key = jax.random.PRNGKey(0)
    k_params, k_img, k_tok = jax.random.split(key, 3)
    params = init_params(k_params, D_img=D_img, D_txt=D_txt, D_map=D_map,
                         D_hid=D_hid, D_ans=D_ans, q_vocab=q_vocab, m_vocab=m_vocab)

    image_feat = jax.random.normal(k_img, (1, D_img, Hh, Ww), jnp.float32)
    token_seq = jax.random.randint(k_tok, (1, seq), 0, q_vocab, jnp.int32)

    vocab = ModuleVocab(['<unk>', 'cat', 'dog', 'red', 'color', 'above', 'left',
                         'shape', 'big', 'small', 'shiny', 'metal'])
    net = DynamicModularNetPallas(params)

    # 1) Full chain: Describe('color')( Transform('above')( Find('cat') ) )
    layout_full = (('Describe', 'color'), (('Transform', 'above'), ('Find', 'cat')))
    scores = jax.block_until_ready(net.forward(layout_full, image_feat, token_seq, vocab))
    scores_ref = dmn_forward_ref(params, layout_full, image_feat, token_seq, vocab)
    assert scores.shape == (1, D_ans)
    assert jnp.allclose(scores, scores_ref, atol=5e-4, rtol=5e-4)

    # 2) And of two Find leaves (exercises the <unk> fallback), fused in one kernel.
    layout_and = (('And', 'and'), (('Find', 'cat'), ('Find', 'unicorn')))
    g_and = jax.block_until_ready(net.forward(layout_and, image_feat, token_seq, vocab))
    g_and_ref = dmn_forward_ref(params, layout_and, image_feat, token_seq, vocab)
    assert g_and.shape == (1, 1, Hh, Ww)
    assert jnp.allclose(g_and, g_and_ref, atol=5e-4, rtol=5e-4)

    # 3) Plain Find leaf.
    layout_find = ('Find', 'dog')
    g_find = jax.block_until_ready(net.forward(layout_find, image_feat, token_seq, vocab))
    g_find_ref = dmn_forward_ref(params, layout_find, image_feat, token_seq, vocab)
    assert g_find.shape == (1, 1, Hh, Ww)
    assert jnp.allclose(g_find, g_find_ref, atol=5e-4, rtol=5e-4)

    print("KERNEL_OK")
</pallas_src>

<mosaic_0001>
module attributes {stable_mosaic.version = 11 : i64} {
  func.func @kernel(%arg0: memref<3x32xf32, #tpu.memory_space<vmem>>, %arg1: memref<16x64xf32, #tpu.memory_space<vmem>>, %arg2: memref<8x32xf32, #tpu.memory_space<vmem>>, %arg3: memref<32x32xf32, #tpu.memory_space<vmem>>, %arg4: memref<32x1xf32, #tpu.memory_space<vmem>>, %arg5: memref<32x16xf32, #tpu.memory_space<vmem>>, %arg6: memref<32x1xf32, #tpu.memory_space<vmem>>, %arg7: memref<1x32xf32, #tpu.memory_space<vmem>>, %arg8: memref<1x1xf32, #tpu.memory_space<vmem>>, %arg9: memref<32x32xf32, #tpu.memory_space<vmem>>, %arg10: memref<32x1xf32, #tpu.memory_space<vmem>>, %arg11: memref<32x16xf32, #tpu.memory_space<vmem>>, %arg12: memref<32x1xf32, #tpu.memory_space<vmem>>, %arg13: memref<32x16xf32, #tpu.memory_space<vmem>>, %arg14: memref<32x1xf32, #tpu.memory_space<vmem>>, %arg15: memref<1x32xf32, #tpu.memory_space<vmem>>, %arg16: memref<1x1xf32, #tpu.memory_space<vmem>>, %arg17: memref<32x32xf32, #tpu.memory_space<vmem>>, %arg18: memref<1x32xf32, #tpu.memory_space<vmem>>, %arg19: memref<16x32xf32, #tpu.memory_space<vmem>>, %arg20: memref<1x32xf32, #tpu.memory_space<vmem>>, %arg21: memref<32x8xf32, #tpu.memory_space<vmem>>, %arg22: memref<1x8xf32, #tpu.memory_space<vmem>>, %arg23: memref<32x512xf32, #tpu.memory_space<vmem>>, %arg24: memref<128x512xf32, #tpu.memory_space<vmem>>, %arg25: memref<1x512xf32, #tpu.memory_space<vmem>>, %arg26: memref<1x8xf32, #tpu.memory_space<vmem>>) attributes {dimension_semantics = [], scalar_prefetch = 0 : i64, scratch_operands = 0 : i64, tpu.core_type = #tpu.core_type<tc>} {
    %c0 = arith.constant 0 : index
    %c0_0 = arith.constant 0 : index
    %0 = vector.load %arg1[%c0, %c0_0] : memref<16x64xf32, #tpu.memory_space<vmem>>, vector<16x64xf32>
    %c0_1 = arith.constant 0 : index
    %c0_2 = arith.constant 0 : index
    %1 = vector.load %arg0[%c0_1, %c0_2] : memref<3x32xf32, #tpu.memory_space<vmem>>, vector<1x32xf32>
    %c0_3 = arith.constant 0 : index
    %c0_4 = arith.constant 0 : index
    %2 = vector.load %arg17[%c0_3, %c0_4] : memref<32x32xf32, #tpu.memory_space<vmem>>, vector<32x32xf32>
    %cst = arith.constant dense<0.000000e+00> : vector<1x32xf32>
    %3 = tpu.matmul %1, %2, %cst {dimension_numbers = #tpu.dot_dimension_numbers<[1], [0], [0], [1], [0, 0, 1, 1], [], []>} : vector<1x32xf32>, vector<32x32xf32>, vector<1x32xf32> -> vector<1x32xf32>
    %c0_5 = arith.constant 0 : index
    %c0_6 = arith.constant 0 : index
    %4 = vector.load %arg18[%c0_5, %c0_6] : memref<1x32xf32, #tpu.memory_space<vmem>>, vector<1x32xf32>
    %5 = arith.addf %3, %4 : vector<1x32xf32>
    %cst_7 = arith.constant 1.000000e+00 : f32
    %6 = vector.broadcast %cst_7 : f32 to vector<1x64xf32>
    %cst_8 = arith.constant dense<0.000000e+00> : vector<1x16xf32>
    %7 = tpu.matmul %6, %0, %cst_8 {dimension_numbers = #tpu.dot_dimension_numbers<[1], [1], [0], [0], [0, 0, 1, 0], [], []>} : vector<1x64xf32>, vector<16x64xf32>, vector<1x16xf32> -> vector<1x16xf32>
    %c0_9 = arith.constant 0 : index
    %c0_10 = arith.constant 0 : index
    %8 = vector.load %arg19[%c0_9, %c0_10] : memref<16x32xf32, #tpu.memory_space<vmem>>, vector<16x32xf32>
    %cst_11 = arith.constant dense<0.000000e+00> : vector<1x32xf32>
    %9 = tpu.matmul %7, %8, %cst_11 {dimension_numbers = #tpu.dot_dimension_numbers<[1], [0], [0], [1], [0, 0, 1, 1], [], []>} : vector<1x16xf32>, vector<16x32xf32>, vector<1x32xf32> -> vector<1x32xf32>
    %c0_12 = arith.constant 0 : index
    %c0_13 = arith.constant 0 : index
    %10 = vector.load %arg20[%c0_12, %c0_13] : memref<1x32xf32, #tpu.memory_space<vmem>>, vector<1x32xf32>
    %11 = arith.addf %9, %10 : vector<1x32xf32>
    %c0_14 = arith.constant 0 : index
    %c0_15 = arith.constant 0 : index
    %12 = vector.load %arg2[%c0_14, %c0_15] : memref<8x32xf32, #tpu.memory_space<vmem>>, vector<8x32xf32>
    %c0_16 = arith.constant 0 : index
    %c0_17 = arith.constant 0 : index
    %13 = vector.load %arg23[%c0_16, %c0_17] : memref<32x512xf32, #tpu.memory_space<vmem>>, vector<32x512xf32>
    %cst_18 = arith.constant dense<0.000000e+00> : vector<8x512xf32>
    %14 = tpu.matmul %12, %13, %cst_18 {dimension_numbers = #tpu.dot_dimension_numbers<[1], [0], [0], [1], [0, 0, 1, 1], [], []>} : vector<8x32xf32>, vector<32x512xf32>, vector<8x512xf32> -> vector<8x512xf32>
    %c0_19 = arith.constant 0 : index
    %c0_20 = arith.constant 0 : index
    %15 = vector.load %arg25[%c0_19, %c0_20] : memref<1x512xf32, #tpu.memory_space<vmem>>, vector<1x512xf32>
    %16 = vector.broadcast %15 : vector<1x512xf32> to vector<8x512xf32>
    %17 = arith.addf %14, %16 : vector<8x512xf32>
    %c0_21 = arith.constant 0 : index
    %c0_22 = arith.constant 0 : index
    %18 = vector.load %arg24[%c0_21, %c0_22] : memref<128x512xf32, #tpu.memory_space<vmem>>, vector<128x512xf32>
    %cst_23 = arith.constant 0.000000e+00 : f32
    %19 = vector.broadcast %cst_23 : f32 to vector<1x128xf32>
    %cst_24 = arith.constant 0.000000e+00 : f32
    %20 = vector.broadcast %cst_24 : f32 to vector<1x128xf32>
    %cst_25 = arith.constant dense<0.000000e+00> : vector<1x512xf32>
    %21 = tpu.matmul %19, %18, %cst_25 {dimension_numbers = #tpu.dot_dimension_numbers<[1], [0], [0], [1], [0, 0, 1, 1], [], []>} : vector<1x128xf32>, vector<128x512xf32>, vector<1x512xf32> -> vector<1x512xf32>
    %22 = vector.extract_strided_slice %17 {offsets = [0, 0], sizes = [1, 512], strides = [1, 1]} : vector<8x512xf32> to vector<1x512xf32>
    %23 = arith.addf %21, %22 : vector<1x512xf32>
    %24 = arith.negf %23 : vector<1x512xf32>
    %25 = math.exp %24 : vector<1x512xf32>
    %cst_26 = arith.constant 1.000000e+00 : f32
    %26 = vector.broadcast %cst_26 : f32 to vector<1x512xf32>
    %27 = arith.addf %26, %25 : vector<1x512xf32>
    %28 = arith.divf %26, %27 : vector<1x512xf32>
    %29 = math.tanh %23 : vector<1x512xf32>
    %30 = vector.extract_strided_slice %28 {offsets = [0, 0], sizes = [1, 128], strides = [1, 1]} : vector<1x512xf32> to vector<1x128xf32>
    %31 = vector.extract_strided_slice %28 {offsets = [0, 128], sizes = [1, 128], strides = [1, 1]} : vector<1x512xf32> to vector<1x128xf32>
    %32 = vector.extract_strided_slice %29 {offsets = [0, 256], sizes = [1, 128], strides = [1, 1]} : vector<1x512xf32> to vector<1x128xf32>
    %33 = vector.extract_strided_slice %28 {offsets = [0, 384], sizes = [1, 128], strides = [1, 1]} : vector<1x512xf32> to vector<1x128xf32>
    %34 = arith.mulf %31, %20 : vector<1x128xf32>
    %35 = arith.mulf %30, %32 : vector<1x128xf32>
    %36 = arith.addf %34, %35 : vector<1x128xf32>
    %37 = math.tanh %36 : vector<1x128xf32>
    %38 = arith.mulf %33, %37 : vector<1x128xf32>
    %cst_27 = arith.constant dense<0.000000e+00> : vector<1x512xf32>
    %39 = tpu.matmul %38, %18, %cst_27 {dimension_numbers = #tpu.dot_dimension_numbers<[1], [0], [0], [1], [0, 0, 1, 1], [], []>} : vector<1x128xf32>, vector<128x512xf32>, vector<1x512xf32> -> vector<1x512xf32>
    %40 = vector.extract_strided_slice %17 {offsets = [1, 0], sizes = [1, 512], strides = [1, 1]} : vector<8x512xf32> to vector<1x512xf32>
    %41 = arith.addf %39, %40 : vector<1x512xf32>
    %42 = arith.negf %41 : vector<1x512xf32>
    %43 = math.exp %42 : vector<1x512xf32>
    %cst_28 = arith.constant 1.000000e+00 : f32
    %44 = vector.broadcast %cst_28 : f32 to vector<1x512xf32>
    %45 = arith.addf %44, %43 : vector<1x512xf32>
    %46 = arith.divf %44, %45 : vector<1x512xf32>
    %47 = math.tanh %41 : vector<1x512xf32>
    %48 = vector.extract_strided_slice %46 {offsets = [0, 0], sizes = [1, 128], strides = [1, 1]} : vector<1x512xf32> to vector<1x128xf32>
    %49 = vector.extract_strided_slice %46 {offsets = [0, 128], sizes = [1, 128], strides = [1, 1]} : vector<1x512xf32> to vector<1x128xf32>
    %50 = vector.extract_strided_slice %47 {offsets = [0, 256], sizes = [1, 128], strides = [1, 1]} : vector<1x512xf32> to vector<1x128xf32>
    %51 = vector.extract_strided_slice %46 {offsets = [0, 384], sizes = [1, 128], strides = [1, 1]} : vector<1x512xf32> to vector<1x128xf32>
    %52 = arith.mulf %49, %36 : vector<1x128xf32>
    %53 = arith.mulf %48, %50 : vector<1x128xf32>
    %54 = arith.addf %52, %53 : vector<1x128xf32>
    %55 = math.tanh %54 : vector<1x128xf32>
    %56 = arith.mulf %51, %55 : vector<1x128xf32>
    %cst_29 = arith.constant dense<0.000000e+00> : vector<1x512xf32>
    %57 = tpu.matmul %56, %18, %cst_29 {dimension_numbers = #tpu.dot_dimension_numbers<[1], [0], [0], [1], [0, 0, 1, 1], [], []>} : vector<1x128xf32>, vector<128x512xf32>, vector<1x512xf32> -> vector<1x512xf32>
    %58 = vector.extract_strided_slice %17 {offsets = [2, 0], sizes = [1, 512], strides = [1, 1]} : vector<8x512xf32> to vector<1x512xf32>
    %59 = arith.addf %57, %58 : vector<1x512xf32>
    %60 = arith.negf %59 : vector<1x512xf32>
    %61 = math.exp %60 : vector<1x512xf32>
    %cst_30 = arith.constant 1.000000e+00 : f32
    %62 = vector.broadcast %cst_30 : f32 to vector<1x512xf32>
    %63 = arith.addf %62, %61 : vector<1x512xf32>
    %64 = arith.divf %62, %63 : vector<1x512xf32>
    %65 = math.tanh %59 : vector<1x512xf32>
    %66 = vector.extract_strided_slice %64 {offsets = [0, 0], sizes = [1, 128], strides = [1, 1]} : vector<1x512xf32> to vector<1x128xf32>
    %67 = vector.extract_strided_slice %64 {offsets = [0, 128], sizes = [1, 128], strides = [1, 1]} : vector<1x512xf32> to vector<1x128xf32>
    %68 = vector.extract_strided_slice %65 {offsets = [0, 256], sizes = [1, 128], strides = [1, 1]} : vector<1x512xf32> to vector<1x128xf32>
    %69 = vector.extract_strided_slice %64 {offsets = [0, 384], sizes = [1, 128], strides = [1, 1]} : vector<1x512xf32> to vector<1x128xf32>
    %70 = arith.mulf %67, %54 : vector<1x128xf32>
    %71 = arith.mulf %66, %68 : vector<1x128xf32>
    %72 = arith.addf %70, %71 : vector<1x128xf32>
    %73 = math.tanh %72 : vector<1x128xf32>
    %74 = arith.mulf %69, %73 : vector<1x128xf32>
    %cst_31 = arith.constant dense<0.000000e+00> : vector<1x512xf32>
    %75 = tpu.matmul %74, %18, %cst_31 {dimension_numbers = #tpu.dot_dimension_numbers<[1], [0], [0], [1], [0, 0, 1, 1], [], []>} : vector<1x128xf32>, vector<128x512xf32>, vector<1x512xf32> -> vector<1x512xf32>
    %76 = vector.extract_strided_slice %17 {offsets = [3, 0], sizes = [1, 512], strides = [1, 1]} : vector<8x512xf32> to vector<1x512xf32>
    %77 = arith.addf %75, %76 : vector<1x512xf32>
    %78 = arith.negf %77 : vector<1x512xf32>
    %79 = math.exp %78 : vector<1x512xf32>
    %cst_32 = arith.constant 1.000000e+00 : f32
    %80 = vector.broadcast %cst_32 : f32 to vector<1x512xf32>
    %81 = arith.addf %80, %79 : vector<1x512xf32>
    %82 = arith.divf %80, %81 : vector<1x512xf32>
    %83 = math.tanh %77 : vector<1x512xf32>
    %84 = vector.extract_strided_slice %82 {offsets = [0, 0], sizes = [1, 128], strides = [1, 1]} : vector<1x512xf32> to vector<1x128xf32>
    %85 = vector.extract_strided_slice %82 {offsets = [0, 128], sizes = [1, 128], strides = [1, 1]} : vector<1x512xf32> to vector<1x128xf32>
    %86 = vector.extract_strided_slice %83 {offsets = [0, 256], sizes = [1, 128], strides = [1, 1]} : vector<1x512xf32> to vector<1x128xf32>
    %87 = vector.extract_strided_slice %82 {offsets = [0, 384], sizes = [1, 128], strides = [1, 1]} : vector<1x512xf32> to vector<1x128xf32>
    %88 = arith.mulf %85, %72 : vector<1x128xf32>
    %89 = arith.mulf %84, %86 : vector<1x128xf32>
    %90 = arith.addf %88, %89 : vector<1x128xf32>
    %91 = math.tanh %90 : vector<1x128xf32>
    %92 = arith.mulf %87, %91 : vector<1x128xf32>
    %cst_33 = arith.constant dense<0.000000e+00> : vector<1x512xf32>
    %93 = tpu.matmul %92, %18, %cst_33 {dimension_numbers = #tpu.dot_dimension_numbers<[1], [0], [0], [1], [0, 0, 1, 1], [], []>} : vector<1x128xf32>, vector<128x512xf32>, vector<1x512xf32> -> vector<1x512xf32>
    %94 = vector.extract_strided_slice %17 {offsets = [4, 0], sizes = [1, 512], strides = [1, 1]} : vector<8x512xf32> to vector<1x512xf32>
    %95 = arith.addf %93, %94 : vector<1x512xf32>
    %96 = arith.negf %95 : vector<1x512xf32>
    %97 = math.exp %96 : vector<1x512xf32>
    %cst_34 = arith.constant 1.000000e+00 : f32
    %98 = vector.broadcast %cst_34 : f32 to vector<1x512xf32>
    %99 = arith.addf %98, %97 : vector<1x512xf32>
    %100 = arith.divf %98, %99 : vector<1x512xf32>
    %101 = math.tanh %95 : vector<1x512xf32>
    %102 = vector.extract_strided_slice %100 {offsets = [0, 0], sizes = [1, 128], strides = [1, 1]} : vector<1x512xf32> to vector<1x128xf32>
    %103 = vector.extract_strided_slice %100 {offsets = [0, 128], sizes = [1, 128], strides = [1, 1]} : vector<1x512xf32> to vector<1x128xf32>
    %104 = vector.extract_strided_slice %101 {offsets = [0, 256], sizes = [1, 128], strides = [1, 1]} : vector<1x512xf32> to vector<1x128xf32>
    %105 = vector.extract_strided_slice %100 {offsets = [0, 384], sizes = [1, 128], strides = [1, 1]} : vector<1x512xf32> to vector<1x128xf32>
    %106 = arith.mulf %103, %90 : vector<1x128xf32>
    %107 = arith.mulf %102, %104 : vector<1x128xf32>
    %108 = arith.addf %106, %107 : vector<1x128xf32>
    %109 = math.tanh %108 : vector<1x128xf32>
    %110 = arith.mulf %105, %109 : vector<1x128xf32>
    %cst_35 = arith.constant dense<0.000000e+00> : vector<1x512xf32>
    %111 = tpu.matmul %110, %18, %cst_35 {dimension_numbers = #tpu.dot_dimension_numbers<[1], [0], [0], [1], [0, 0, 1, 1], [], []>} : vector<1x128xf32>, vector<128x512xf32>, vector<1x512xf32> -> vector<1x512xf32>
    %112 = vector.extract_strided_slice %17 {offsets = [5, 0], sizes = [1, 512], strides = [1, 1]} : vector<8x512xf32> to vector<1x512xf32>
    %113 = arith.addf %111, %112 : vector<1x512xf32>
    %114 = arith.negf %113 : vector<1x512xf32>
    %115 = math.exp %114 : vector<1x512xf32>
    %cst_36 = arith.constant 1.000000e+00 : f32
    %116 = vector.broadcast %cst_36 : f32 to vector<1x512xf32>
    %117 = arith.addf %116, %115 : vector<1x512xf32>
    %118 = arith.divf %116, %117 : vector<1x512xf32>
    %119 = math.tanh %113 : vector<1x512xf32>
    %120 = vector.extract_strided_slice %118 {offsets = [0, 0], sizes = [1, 128], strides = [1, 1]} : vector<1x512xf32> to vector<1x128xf32>
    %121 = vector.extract_strided_slice %118 {offsets = [0, 128], sizes = [1, 128], strides = [1, 1]} : vector<1x512xf32> to vector<1x128xf32>
    %122 = vector.extract_strided_slice %119 {offsets = [0, 256], sizes = [1, 128], strides = [1, 1]} : vector<1x512xf32> to vector<1x128xf32>
    %123 = vector.extract_strided_slice %118 {offsets = [0, 384], sizes = [1, 128], strides = [1, 1]} : vector<1x512xf32> to vector<1x128xf32>
    %124 = arith.mulf %121, %108 : vector<1x128xf32>
    %125 = arith.mulf %120, %122 : vector<1x128xf32>
    %126 = arith.addf %124, %125 : vector<1x128xf32>
    %127 = math.tanh %126 : vector<1x128xf32>
    %128 = arith.mulf %123, %127 : vector<1x128xf32>
    %cst_37 = arith.constant dense<0.000000e+00> : vector<1x512xf32>
    %129 = tpu.matmul %128, %18, %cst_37 {dimension_numbers = #tpu.dot_dimension_numbers<[1], [0], [0], [1], [0, 0, 1, 1], [], []>} : vector<1x128xf32>, vector<128x512xf32>, vector<1x512xf32> -> vector<1x512xf32>
    %130 = vector.extract_strided_slice %17 {offsets = [6, 0], sizes = [1, 512], strides = [1, 1]} : vector<8x512xf32> to vector<1x512xf32>
    %131 = arith.addf %129, %130 : vector<1x512xf32>
    %132 = arith.negf %131 : vector<1x512xf32>
    %133 = math.exp %132 : vector<1x512xf32>
    %cst_38 = arith.constant 1.000000e+00 : f32
    %134 = vector.broadcast %cst_38 : f32 to vector<1x512xf32>
    %135 = arith.addf %134, %133 : vector<1x512xf32>
    %136 = arith.divf %134, %135 : vector<1x512xf32>
    %137 = math.tanh %131 : vector<1x512xf32>
    %138 = vector.extract_strided_slice %136 {offsets = [0, 0], sizes = [1, 128], strides = [1, 1]} : vector<1x512xf32> to vector<1x128xf32>
    %139 = vector.extract_strided_slice %136 {offsets = [0, 128], sizes = [1, 128], strides = [1, 1]} : vector<1x512xf32> to vector<1x128xf32>
    %140 = vector.extract_strided_slice %137 {offsets = [0, 256], sizes = [1, 128], strides = [1, 1]} : vector<1x512xf32> to vector<1x128xf32>
    %141 = vector.extract_strided_slice %136 {offsets = [0, 384], sizes = [1, 128], strides = [1, 1]} : vector<1x512xf32> to vector<1x128xf32>
    %142 = arith.mulf %139, %126 : vector<1x128xf32>
    %143 = arith.mulf %138, %140 : vector<1x128xf32>
    %144 = arith.addf %142, %143 : vector<1x128xf32>
    %145 = math.tanh %144 : vector<1x128xf32>
    %146 = arith.mulf %141, %145 : vector<1x128xf32>
    %cst_39 = arith.constant dense<0.000000e+00> : vector<1x512xf32>
    %147 = tpu.matmul %146, %18, %cst_39 {dimension_numbers = #tpu.dot_dimension_numbers<[1], [0], [0], [1], [0, 0, 1, 1], [], []>} : vector<1x128xf32>, vector<128x512xf32>, vector<1x512xf32> -> vector<1x512xf32>
    %148 = vector.extract_strided_slice %17 {offsets = [7, 0], sizes = [1, 512], strides = [1, 1]} : vector<8x512xf32> to vector<1x512xf32>
    %149 = arith.addf %147, %148 : vector<1x512xf32>
    %150 = arith.negf %149 : vector<1x512xf32>
    %151 = math.exp %150 : vector<1x512xf32>
    %cst_40 = arith.constant 1.000000e+00 : f32
    %152 = vector.broadcast %cst_40 : f32 to vector<1x512xf32>
    %153 = arith.addf %152, %151 : vector<1x512xf32>
    %154 = arith.divf %152, %153 : vector<1x512xf32>
    %155 = math.tanh %149 : vector<1x512xf32>
    %156 = vector.extract_strided_slice %154 {offsets = [0, 0], sizes = [1, 128], strides = [1, 1]} : vector<1x512xf32> to vector<1x128xf32>
    %157 = vector.extract_strided_slice %154 {offsets = [0, 128], sizes = [1, 128], strides = [1, 1]} : vector<1x512xf32> to vector<1x128xf32>
    %158 = vector.extract_strided_slice %155 {offsets = [0, 256], sizes = [1, 128], strides = [1, 1]} : vector<1x512xf32> to vector<1x128xf32>
    %159 = vector.extract_strided_slice %154 {offsets = [0, 384], sizes = [1, 128], strides = [1, 1]} : vector<1x512xf32> to vector<1x128xf32>
    %160 = arith.mulf %157, %144 : vector<1x128xf32>
    %161 = arith.mulf %156, %158 : vector<1x128xf32>
    %162 = arith.addf %160, %161 : vector<1x128xf32>
    %163 = math.tanh %162 : vector<1x128xf32>
    %164 = arith.mulf %159, %163 : vector<1x128xf32>
    %165 = vector.extract_strided_slice %164 {offsets = [0, 0], sizes = [1, 32], strides = [1, 1]} : vector<1x128xf32> to vector<1x32xf32>
    %166 = arith.mulf %11, %5 : vector<1x32xf32>
    %167 = arith.mulf %166, %165 : vector<1x32xf32>
    %168 = arith.mulf %167, %167 : vector<1x32xf32>
    %cst_41 = arith.constant dense<0.000000e+00> : vector<1xf32>
    %169 = vector.multi_reduction <add>, %168, %cst_41 [1] : vector<1x32xf32> to vector<1xf32>
    %170 = vector.shape_cast %169 : vector<1xf32> to vector<1x1xf32>
    %171 = math.sqrt %170 : vector<1x1xf32>
    %cst_42 = arith.constant 9.99999996E-13 : f32
    %172 = vector.broadcast %cst_42 : f32 to vector<1x1xf32>
    %173 = arith.maximumf %171, %172 : vector<1x1xf32>
    %174 = vector.broadcast %173 : vector<1x1xf32> to vector<1x32xf32>
    %175 = arith.divf %167, %174 : vector<1x32xf32>
    %c0_43 = arith.constant 0 : index
    %c0_44 = arith.constant 0 : index
    %176 = vector.load %arg21[%c0_43, %c0_44] : memref<32x8xf32, #tpu.memory_space<vmem>>, vector<32x8xf32>
    %cst_45 = arith.constant dense<0.000000e+00> : vector<1x8xf32>
    %177 = tpu.matmul %175, %176, %cst_45 {dimension_numbers = #tpu.dot_dimension_numbers<[1], [0], [0], [1], [0, 0, 1, 1], [], []>} : vector<1x32xf32>, vector<32x8xf32>, vector<1x8xf32> -> vector<1x8xf32>
    %c0_46 = arith.constant 0 : index
    %c0_47 = arith.constant 0 : index
    %178 = vector.load %arg22[%c0_46, %c0_47] : memref<1x8xf32, #tpu.memory_space<vmem>>, vector<1x8xf32>
    %179 = arith.addf %177, %178 : vector<1x8xf32>
    %c0_48 = arith.constant 0 : index
    %c0_49 = arith.constant 0 : index
    %180 = vector.load %arg26[%c0_48, %c0_49] : memref<1x8xf32, #tpu.memory_space<vmem>>, vector<1x8xf32>
    tpu.vector_store %arg26[%c0_48, %c0_49], %179 {strides = array<i32>} : memref<1x8xf32, #tpu.memory_space<vmem>>, vector<1x8xf32>,
    return
  }
}

</mosaic_0001>

<llo_original>
// kernel: _fused_layout_forward.1
$region0: #{_fused_layout_forward.1}
  #allocation0 [shape = 'u32[]', space=smem, size = 0x4, offset = 0x4, fixed_abs, tag = 'smem constant byte address 0x4 - core index']
  #allocation1 [shape = 'u32[72,128]{1,0:T(1,128)}', space=vmem, size = 0x9000, scoped, tag = 'internal scratch']
  #allocation2 [shape = 'f32[1,1]{1,0:T(1,128)S(1)}', space=vmem, size = 0x200, scoped, tag = 'scoped memory for _fused_layout_forward.1']
  #allocation3 [shape = 'f32[1,1]{1,0:T(1,128)S(1)}', space=vmem, size = 0x200, scoped, tag = 'scoped memory for _fused_layout_forward.1']
  %s0 = inlined_call_operand.vmem [shape: f32[3,32], index: 0, kind: input, shape index: {}]
  %s1 = inlined_call_operand.vmem [shape: f32[16,64], index: 1, kind: input, shape index: {}]
  %s2 = inlined_call_operand.vmem [shape: f32[8,32], index: 2, kind: input, shape index: {}]
  %s3 = inlined_call_operand.vmem [shape: f32[32,32], index: 3, kind: input, shape index: {}]
  %s4 = inlined_call_operand.vmem [shape: f32[32,1], index: 4, kind: input, shape index: {}]
  %s5 = inlined_call_operand.vmem [shape: f32[32,16], index: 5, kind: input, shape index: {}]
  %s6 = inlined_call_operand.vmem [shape: f32[32,1], index: 6, kind: input, shape index: {}]
  %s7 = inlined_call_operand.vmem [shape: f32[1,32], index: 7, kind: input, shape index: {}]
  %s8 = inlined_call_operand.<no memory space> [shape: f32[1,1], index: 8, kind: input, shape index: {}]
  %s9 = inlined_call_operand.vmem [shape: f32[32,32], index: 9, kind: input, shape index: {}]
  %s10 = inlined_call_operand.vmem [shape: f32[32,1], index: 10, kind: input, shape index: {}]
  %s11 = inlined_call_operand.vmem [shape: f32[32,16], index: 11, kind: input, shape index: {}]
  %s12 = inlined_call_operand.vmem [shape: f32[32,1], index: 12, kind: input, shape index: {}]
  %s13 = inlined_call_operand.vmem [shape: f32[32,16], index: 13, kind: input, shape index: {}]
  %s14 = inlined_call_operand.vmem [shape: f32[32,1], index: 14, kind: input, shape index: {}]
  %s15 = inlined_call_operand.vmem [shape: f32[1,32], index: 15, kind: input, shape index: {}]
  %s16 = inlined_call_operand.<no memory space> [shape: f32[1,1], index: 16, kind: input, shape index: {}]
  %s17 = inlined_call_operand.vmem [shape: f32[32,32], index: 17, kind: input, shape index: {}]
  %s18 = inlined_call_operand.vmem [shape: f32[1,32], index: 18, kind: input, shape index: {}]
  %s19 = inlined_call_operand.vmem [shape: f32[16,32], index: 19, kind: input, shape index: {}]
  %s20 = inlined_call_operand.vmem [shape: f32[1,32], index: 20, kind: input, shape index: {}]
  %s21 = inlined_call_operand.vmem [shape: f32[32,8], index: 21, kind: input, shape index: {}]
  %s22 = inlined_call_operand.vmem [shape: f32[1,8], index: 22, kind: input, shape index: {}]
  %s23 = inlined_call_operand.vmem [shape: f32[32,512], index: 23, kind: input, shape index: {}]
  %s24 = inlined_call_operand.hbm [shape: f32[128,512], index: 24, kind: input, shape index: {}]
  %s25 = inlined_call_operand.vmem [shape: f32[1,512], index: 25, kind: input, shape index: {}]
  %s26 = inlined_call_operand.hbm [shape: f32[1,8], index: 26, kind: output, shape index: {}]
  %s27 = sld [smem:[#allocation0]]
  $region118: #{_fused_layout_forward.1} parent=0
    _
  %s29 = ssub.s32 1, %s27
  %s30 = scalar_select 0, %s29, %s27
  %v31 = vstv %s8
  %32 = vst [vmem:[#allocation2] sm:$0x1] %v31
  %v33 = vstv %s16
  %34 = vst [vmem:[#allocation3] sm:$0x1] %v33
  $region1: #{_fused_layout_forward.1} parent=0
    #allocation4 [shape = 'u8[262144]{0}', space=vmem, size = 0x40000, scoped, tag = 'input window, operand 24, single buffered']
    #allocation5 [shape = 's32[1]{0}', space=sflag, size = 0x4, scoped, tag = 'scoped memory for _fused_layout_forward.1']
    #allocation6 [shape = 's32[1]{0}', space=sflag, size = 0x4, scoped, tag = 'scoped memory for _fused_layout_forward.1']
    #allocation7 [shape = 'u8[512]{0}', space=vmem, size = 0x400, scoped, tag = 'output window, operand 0, single buffered']
    %35 = vsyncpa [#allocation5], 0
    %36 = vsyncpa [#allocation6], 0
    // Predicated region
    $region2: #{_fused_layout_forward.1} parent=1 // pred_check
      _
    $region3: #{_fused_layout_forward.1} parent=1 // pred_check_branch
      %38 = sbr.rel (0) target = $region5
    $region4: #{_fused_layout_forward.1} parent=1 // pred_region
      _
    $region5: #{_fused_layout_forward.1} parent=1 // pred_fallthru
      _
    // Predicated region
    $region6: #{_fused_layout_forward.1} parent=1 // pred_check
      _
    $region7: #{_fused_layout_forward.1} parent=1 // pred_check_branch
      %40 = sbr.rel (0) target = $region9
    $region8: #{_fused_layout_forward.1} parent=1 // pred_region
      _
    $region9: #{_fused_layout_forward.1} parent=1 // pred_fallthru
      _
    // Predicated region
    $region10: #{_fused_layout_forward.1} parent=1 // pred_check
      _
    $region11: #{_fused_layout_forward.1} parent=1 // pred_check_branch
      %42 = sbr.rel (0) target = $region13
    $region12: #{_fused_layout_forward.1} parent=1 // pred_region
      _
    $region13: #{_fused_layout_forward.1} parent=1 // pred_fallthru
      _
    // Predicated region
    $region14: #{_fused_layout_forward.1} parent=1 // pred_check
      _
    $region15: #{_fused_layout_forward.1} parent=1 // pred_check_branch
      %44 = sbr.rel (0) target = $region17
    $region16: #{_fused_layout_forward.1} parent=1 // pred_region
      _
    $region17: #{_fused_layout_forward.1} parent=1 // pred_fallthru
      _
    // Predicated region
    $region18: #{_fused_layout_forward.1} parent=1 // pred_check
      _
    $region19: #{_fused_layout_forward.1} parent=1 // pred_check_branch
      %46 = sbr.rel (0) target = $region21
    $region20: #{_fused_layout_forward.1} parent=1 // pred_region
      _
    $region21: #{_fused_layout_forward.1} parent=1 // pred_fallthru
      _
    // Predicated region
    $region22: #{_fused_layout_forward.1} parent=1 // pred_check
      _
    $region23: #{_fused_layout_forward.1} parent=1 // pred_check_branch
      %48 = sbr.rel (0) target = $region25
    $region24: #{_fused_layout_forward.1} parent=1 // pred_region
      _
    $region25: #{_fused_layout_forward.1} parent=1 // pred_fallthru
      _
    // Predicated region
    $region26: #{_fused_layout_forward.1} parent=1 // pred_check
      _
    $region27: #{_fused_layout_forward.1} parent=1 // pred_check_branch
      %50 = sbr.rel (0) target = $region29
    $region28: #{_fused_layout_forward.1} parent=1 // pred_region
      _
    $region29: #{_fused_layout_forward.1} parent=1 // pred_fallthru
      _
    // Predicated region
    $region30: #{_fused_layout_forward.1} parent=1 // pred_check
      _
    $region31: #{_fused_layout_forward.1} parent=1 // pred_check_branch
      %52 = sbr.rel (0) target = $region33
    $region32: #{_fused_layout_forward.1} parent=1 // pred_region
      _
    $region33: #{_fused_layout_forward.1} parent=1 // pred_fallthru
      _
    // Predicated region
    $region34: #{_fused_layout_forward.1} parent=1 // pred_check
      _
    $region35: #{_fused_layout_forward.1} parent=1 // pred_check_branch
      %54 = sbr.rel (0) target = $region37
    $region36: #{_fused_layout_forward.1} parent=1 // pred_region
      _
    $region37: #{_fused_layout_forward.1} parent=1 // pred_fallthru
      _
    // Predicated region
    $region38: #{_fused_layout_forward.1} parent=1 // pred_check
      _
    $region39: #{_fused_layout_forward.1} parent=1 // pred_check_branch
      %56 = sbr.rel (0) target = $region41
    $region40: #{_fused_layout_forward.1} parent=1 // pred_region
      _
    $region41: #{_fused_layout_forward.1} parent=1 // pred_fallthru
      _
    // Predicated region
    $region42: #{_fused_layout_forward.1} parent=1 // pred_check
      _
    $region43: #{_fused_layout_forward.1} parent=1 // pred_check_branch
      %58 = sbr.rel (0) target = $region45
    $region44: #{_fused_layout_forward.1} parent=1 // pred_region
      _
    $region45: #{_fused_layout_forward.1} parent=1 // pred_fallthru
      _
    // Predicated region
    $region46: #{_fused_layout_forward.1} parent=1 // pred_check
      _
    $region47: #{_fused_layout_forward.1} parent=1 // pred_check_branch
      %60 = sbr.rel (0) target = $region49
    $region48: #{_fused_layout_forward.1} parent=1 // pred_region
      _
    $region49: #{_fused_layout_forward.1} parent=1 // pred_fallthru
      _
    // Predicated region
    $region50: #{_fused_layout_forward.1} parent=1 // pred_check
      _
    $region51: #{_fused_layout_forward.1} parent=1 // pred_check_branch
      %62 = sbr.rel (0) target = $region53
    $region52: #{_fused_layout_forward.1} parent=1 // pred_region
      _
    $region53: #{_fused_layout_forward.1} parent=1 // pred_fallthru
      _
    // Predicated region
    $region54: #{_fused_layout_forward.1} parent=1 // pred_check
      _
    $region55: #{_fused_layout_forward.1} parent=1 // pred_check_branch
      %64 = sbr.rel (0) target = $region57
    $region56: #{_fused_layout_forward.1} parent=1 // pred_region
      _
    $region57: #{_fused_layout_forward.1} parent=1 // pred_fallthru
      _
    // Predicated region
    $region58: #{_fused_layout_forward.1} parent=1 // pred_check
      _
    $region59: #{_fused_layout_forward.1} parent=1 // pred_check_branch
      %66 = sbr.rel (0) target = $region61
    $region60: #{_fused_layout_forward.1} parent=1 // pred_region
      _
    $region61: #{_fused_layout_forward.1} parent=1 // pred_fallthru
      _
    // Predicated region
    $region62: #{_fused_layout_forward.1} parent=1 // pred_check
      _
    $region63: #{_fused_layout_forward.1} parent=1 // pred_check_branch
      %68 = sbr.rel (0) target = $region65
    $region64: #{_fused_layout_forward.1} parent=1 // pred_region
      _
    $region65: #{_fused_layout_forward.1} parent=1 // pred_fallthru
      _
    // Predicated region
    $region66: #{_fused_layout_forward.1} parent=1 // pred_check
      _
    $region67: #{_fused_layout_forward.1} parent=1 // pred_check_branch
      %70 = sbr.rel (0) target = $region69
    $region68: #{_fused_layout_forward.1} parent=1 // pred_region
      _
    $region69: #{_fused_layout_forward.1} parent=1 // pred_fallthru
      _
    // Predicated region
    $region70: #{_fused_layout_forward.1} parent=1 // pred_check
      _
    $region71: #{_fused_layout_forward.1} parent=1 // pred_check_branch
      %72 = sbr.rel (0) target = $region73
    $region72: #{_fused_layout_forward.1} parent=1 // pred_region
      _
    $region73: #{_fused_layout_forward.1} parent=1 // pred_fallthru
      _
    // Predicated region
    $region74: #{_fused_layout_forward.1} parent=1 // pred_check
      _
    $region75: #{_fused_layout_forward.1} parent=1 // pred_check_branch
      %74 = sbr.rel (0) target = $region77
    $region76: #{_fused_layout_forward.1} parent=1 // pred_region
      _
    $region77: #{_fused_layout_forward.1} parent=1 // pred_fallthru
      _
    // Predicated region
    $region78: #{_fused_layout_forward.1} parent=1 // pred_check
      _
    $region79: #{_fused_layout_forward.1} parent=1 // pred_check_branch
      %76 = sbr.rel (0) target = $region81
    $region80: #{_fused_layout_forward.1} parent=1 // pred_region
      _
    $region81: #{_fused_layout_forward.1} parent=1 // pred_fallthru
      _
    // Predicated region
    $region82: #{_fused_layout_forward.1} parent=1 // pred_check
      _
    $region83: #{_fused_layout_forward.1} parent=1 // pred_check_branch
      %78 = sbr.rel (0) target = $region85
    $region84: #{_fused_layout_forward.1} parent=1 // pred_region
      _
    $region85: #{_fused_layout_forward.1} parent=1 // pred_fallthru
      _
    // Predicated region
    $region86: #{_fused_layout_forward.1} parent=1 // pred_check
      _
    $region87: #{_fused_layout_forward.1} parent=1 // pred_check_branch
      %80 = sbr.rel (0) target = $region89
    $region88: #{_fused_layout_forward.1} parent=1 // pred_region
      _
    $region89: #{_fused_layout_forward.1} parent=1 // pred_fallthru
      _
    // Predicated region
    $region90: #{_fused_layout_forward.1} parent=1 // pred_check
      _
    $region91: #{_fused_layout_forward.1} parent=1 // pred_check_branch
      %82 = sbr.rel (0) target = $region93
    $region92: #{_fused_layout_forward.1} parent=1 // pred_region
      _
    $region93: #{_fused_layout_forward.1} parent=1 // pred_fallthru
      _
    // Predicated region
    $region94: #{_fused_layout_forward.1} parent=1 // pred_check
      _
    $region95: #{_fused_layout_forward.1} parent=1 // pred_check_branch
      %84 = sbr.rel (0) target = $region97
    $region96: #{_fused_layout_forward.1} parent=1 // pred_region
      _
    $region97: #{_fused_layout_forward.1} parent=1 // pred_fallthru
      _
    // Predicated region
    $region98: #{_fused_layout_forward.1} parent=1 // pred_check
      _
    $region99: #{_fused_layout_forward.1} parent=1 // pred_check_branch
      %86 = sbr.rel (0) target = $region101
    $region100: #{_fused_layout_forward.1} parent=1 // pred_region
      %88 = vsyncadd [#allocation5], 0
      %s89 = sshll.u32 %s24, 4
      %s90 = int_to_ptr.hbm [resolvable:$true] %s89
      %s91 = sshll.u32 [#allocation4], 4
      %s92 = int_to_ptr.vmem [resolvable:$true] %s91
      %97 = dma.hbm_to_vmem [thread:$0]  %s90, 8192, %s92, [#allocation5], 512, 512, 32
    $region101: #{_fused_layout_forward.1} parent=1 // pred_fallthru
      _
    // Predicated region
    $region102: #{_fused_layout_forward.1} parent=1 // pred_check
      _
    $region103: #{_fused_layout_forward.1} parent=1 // pred_check_branch
      %99 = sbr.rel (0) target = $region105
    $region104: #{_fused_layout_forward.1} parent=1 // pred_region
      _
    $region105: #{_fused_layout_forward.1} parent=1 // pred_fallthru
      _
    // Predicated region
    $region106: #{_fused_layout_forward.1} parent=1 // pred_check
      _
    $region107: #{_fused_layout_forward.1} parent=1 // pred_check_branch
      %101 = sbr.rel (0) target = $region109
    $region108: #{_fused_layout_forward.1} parent=1 // pred_region
      %103 = dma.done [#allocation5], 8192
    $region109: #{_fused_layout_forward.1} parent=1 // pred_fallthru
      _
    %v104 = vld [vmem:[%s1] sm:$0xff]
    %v105 = vld [vmem:[%s1 + $0x8] sm:$0xff]
    %v106 = vld [vmem:[%s0] sm:$0x1]
    %v107 = vld [vmem:[%s17] sm:$0xff]
    %v108 = vld [vmem:[%s17 + $0x8] sm:$0xff]
    %v109 = vld [vmem:[%s17 + $0x10] sm:$0xff]
    %v110 = vld [vmem:[%s17 + $0x18] sm:$0xff]
    %v111 = vld [vmem:[%s18] sm:$0x1]
    %vm112 = vcmask 261120
    %v114 = vsel %vm112, %v106, 0
    %116 = vmatpush.msra.mxu0 0.0
    %117 = vmatpush.msra.mxu0 0.0
    %118 = vmatpush.msra.mxu0 0.0
    %119 = vmatpush.msra.mxu0 0.0
    %120 = vmatpush.msra.mxu0 0.0
    %121 = vmatpush.msra.mxu0 0.0
    %122 = vmatpush.msra.mxu0 0.0
    %123 = vmatpush.msra.mxu0 0.0
    %124 = vmatpush.msra.mxu0 0.0
    %125 = vmatpush.msra.mxu0 0.0
    %126 = vmatpush.msra.mxu0 0.0
    %127 = vmatpush.msra.mxu0 0.0
    %128 = vmatpush.msra.mxu0 %v110
    %129 = vmatpush.msra.mxu0 %v109
    %130 = vmatpush.msra.mxu0 %v108
    %131 = vmatpush.msra.mxu0 %v107
    %132 = vmatmul.f32.gmra.mxu0 %v114
    %v133 = vpop.f32.mrf.mxu0
    %v134 = vadd.f32 %v111, %v133
    %135 = vdwg.mxu0
    %vm136 = vcmask 523264
    %v138 = vsel %vm136, 1.0, 0
    %v141 = vsel %vm136, %v104, 0
    %v144 = vsel %vm136, %v105, 0
    %146 = vmatpush.xpose.msra.mxu0 0.0
    %147 = vmatpush.xpose.msra.mxu0 0.0
    %148 = vmatpush.xpose.msra.mxu0 0.0
    %149 = vmatpush.xpose.msra.mxu0 0.0
    %150 = vmatpush.xpose.msra.mxu0 0.0
    %151 = vmatpush.xpose.msra.mxu0 0.0
    %152 = vmatpush.xpose.msra.mxu0 0.0
    %153 = vmatpush.xpose.msra.mxu0 0.0
    %154 = vmatpush.xpose.msra.mxu0 0.0
    %155 = vmatpush.xpose.msra.mxu0 0.0
    %156 = vmatpush.xpose.msra.mxu0 0.0
    %157 = vmatpush.xpose.msra.mxu0 0.0
    %158 = vmatpush.xpose.msra.mxu0 0.0
    %159 = vmatpush.xpose.msra.mxu0 0.0
    %160 = vmatpush.xpose.msra.mxu0 %v144
    %161 = vmatpush.xpose.msra.mxu0 %v141
    %162 = vmatmul.f32.gmra.mxu0 %v138
    %v163 = vpop.f32.mrf.mxu0
    %v164 = vadd.f32 0.0, %v163
    %165 = vdwg.mxu0
    %v166 = vld [vmem:[%s19] sm:$0xff]
    %v167 = vld [vmem:[%s19 + $0x8] sm:$0xff]
    %v168 = vld [vmem:[%s20] sm:$0x1]
    %vm169 = vcmask 130048
    %v171 = vsel %vm169, %v164, 0
    %173 = vmatpush.msra.mxu0 0.0
    %174 = vmatpush.msra.mxu0 0.0
    %175 = vmatpush.msra.mxu0 0.0
    %176 = vmatpush.msra.mxu0 0.0
    %177 = vmatpush.msra.mxu0 0.0
    %178 = vmatpush.msra.mxu0 0.0
    %179 = vmatpush.msra.mxu0 0.0
    %180 = vmatpush.msra.mxu0 0.0
    %181 = vmatpush.msra.mxu0 0.0
    %182 = vmatpush.msra.mxu0 0.0
    %183 = vmatpush.msra.mxu0 0.0
    %184 = vmatpush.msra.mxu0 0.0
    %185 = vmatpush.msra.mxu0 0.0
    %186 = vmatpush.msra.mxu0 0.0
    %187 = vmatpush.msra.mxu0 %v167
    %188 = vmatpush.msra.mxu0 %v166
    %189 = vmatmul.f32.gmra.mxu0 %v171
    %v190 = vpop.f32.mrf.mxu0
    %v191 = vadd.f32 %v168, %v190
    %192 = vdwg.mxu0
    %v193 = vld [vmem:[%s2] sm:$0xff]
    %v194 = vld [vmem:[%s23] sm:$0xff]
    %v195 = vld [vmem:[%s23 + $0x8] sm:$0xff]
    %v196 = vld [vmem:[%s23 + $0x10] sm:$0xff]
    %v197 = vld [vmem:[%s23 + $0x18] sm:$0xff]
    %v198 = vld [vmem:[%s23 + $0x20] sm:$0xff]
    %v199 = vld [vmem:[%s23 + $0x28] sm:$0xff]
    %v200 = vld [vmem:[%s23 + $0x30] sm:$0xff]
    %v201 = vld [vmem:[%s23 + $0x38] sm:$0xff]
    %v202 = vld [vmem:[%s23 + $0x40] sm:$0xff]
    %v203 = vld [vmem:[%s23 + $0x48] sm:$0xff]
    %v204 = vld [vmem:[%s23 + $0x50] sm:$0xff]
    %v205 = vld [vmem:[%s23 + $0x58] sm:$0xff]
    %v206 = vld [vmem:[%s23 + $0x60] sm:$0xff]
    %v207 = vld [vmem:[%s23 + $0x68] sm:$0xff]
    %v208 = vld [vmem:[%s23 + $0x70] sm:$0xff]
    %v209 = vld [vmem:[%s23 + $0x78] sm:$0xff]
    %v210 = vld [vmem:[%s25] sm:$0xf]
    %v212 = vperm.slane %v210, 0
    %v213 = vperm.slane %v210, 1
    %v214 = vperm.slane %v210, 2
    %v215 = vperm.slane %v210, 3
    %v221 = vsel %vm112, %v193, 0
    %223 = vmatpush.msra.mxu0 0.0
    %224 = vmatpush.msra.mxu0 0.0
    %225 = vmatpush.msra.mxu0 0.0
    %226 = vmatpush.msra.mxu0 0.0
    %227 = vmatpush.msra.mxu0 0.0
    %228 = vmatpush.msra.mxu0 0.0
    %229 = vmatpush.msra.mxu0 0.0
    %230 = vmatpush.msra.mxu0 0.0
    %231 = vmatpush.msra.mxu0 0.0
    %232 = vmatpush.msra.mxu0 0.0
    %233 = vmatpush.msra.mxu0 0.0
    %234 = vmatpush.msra.mxu0 0.0
    %235 = vmatpush.msra.mxu0 %v206
    %236 = vmatpush.msra.mxu0 %v202
    %237 = vmatpush.msra.mxu0 %v198
    %238 = vmatpush.msra.mxu0 %v194
    %239 = vmatmul.f32.gmra.mxu0 %v221
    %v240 = vpop.f32.mrf.mxu0
    %v241 = vadd.f32 %v212, %v240
    %242 = vdwg.mxu0
    %243 = vmatpush.msra.mxu0 0.0
    %244 = vmatpush.msra.mxu0 0.0
    %245 = vmatpush.msra.mxu0 0.0
    %246 = vmatpush.msra.mxu0 0.0
    %247 = vmatpush.msra.mxu0 0.0
    %248 = vmatpush.msra.mxu0 0.0
    %249 = vmatpush.msra.mxu0 0.0
    %250 = vmatpush.msra.mxu0 0.0
    %251 = vmatpush.msra.mxu0 0.0
    %252 = vmatpush.msra.mxu0 0.0
    %253 = vmatpush.msra.mxu0 0.0
    %254 = vmatpush.msra.mxu0 0.0
    %255 = vmatpush.msra.mxu0 %v207
    %256 = vmatpush.msra.mxu0 %v203
    %257 = vmatpush.msra.mxu0 %v199
    %258 = vmatpush.msra.mxu0 %v195
    %259 = vmatmul.f32.gmra.mxu0 %v221
    %v260 = vpop.f32.mrf.mxu0
    %v261 = vadd.f32 %v213, %v260
    %262 = vdwg.mxu0
    %263 = vmatpush.msra.mxu0 0.0
    %264 = vmatpush.msra.mxu0 0.0
    %265 = vmatpush.msra.mxu0 0.0
    %266 = vmatpush.msra.mxu0 0.0
    %267 = vmatpush.msra.mxu0 0.0
    %268 = vmatpush.msra.mxu0 0.0
    %269 = vmatpush.msra.mxu0 0.0
    %270 = vmatpush.msra.mxu0 0.0
    %271 = vmatpush.msra.mxu0 0.0
    %272 = vmatpush.msra.mxu0 0.0
    %273 = vmatpush.msra.mxu0 0.0
    %274 = vmatpush.msra.mxu0 0.0
    %275 = vmatpush.msra.mxu0 %v208
    %276 = vmatpush.msra.mxu0 %v204
    %277 = vmatpush.msra.mxu0 %v200
    %278 = vmatpush.msra.mxu0 %v196
    %279 = vmatmul.f32.gmra.mxu0 %v221
    %v280 = vpop.f32.mrf.mxu0
    %v281 = vadd.f32 %v214, %v280
    %282 = vdwg.mxu0
    %283 = vmatpush.msra.mxu0 0.0
    %284 = vmatpush.msra.mxu0 0.0
    %285 = vmatpush.msra.mxu0 0.0
    %286 = vmatpush.msra.mxu0 0.0
    %287 = vmatpush.msra.mxu0 0.0
    %288 = vmatpush.msra.mxu0 0.0
    %289 = vmatpush.msra.mxu0 0.0
    %290 = vmatpush.msra.mxu0 0.0
    %291 = vmatpush.msra.mxu0 0.0
    %292 = vmatpush.msra.mxu0 0.0
    %293 = vmatpush.msra.mxu0 0.0
    %294 = vmatpush.msra.mxu0 0.0
    %295 = vmatpush.msra.mxu0 %v209
    %296 = vmatpush.msra.mxu0 %v205
    %297 = vmatpush.msra.mxu0 %v201
    %298 = vmatpush.msra.mxu0 %v197
    %299 = vmatmul.f32.gmra.mxu0 %v221
    %v300 = vpop.f32.mrf.mxu0
    %v301 = vadd.f32 %v215, %v300
    %302 = vdwg.mxu0
    %v303 = vld [vmem:[#allocation4] sm:$0xff]
    %v304 = vld [vmem:[#allocation4 + $0x8] sm:$0xff]
    %v305 = vld [vmem:[#allocation4 + $0x10] sm:$0xff]
    %v306 = vld [vmem:[#allocation4 + $0x18] sm:$0xff]
    %v307 = vld [vmem:[#allocation4 + $0x20] sm:$0xff]
    %v308 = vld [vmem:[#allocation4 + $0x28] sm:$0xff]
    %v309 = vld [vmem:[#allocation4 + $0x30] sm:$0xff]
    %v310 = vld [vmem:[#allocation4 + $0x38] sm:$0xff]
    %v311 = vld [vmem:[#allocation4 + $0x40] sm:$0xff]
    %v312 = vld [vmem:[#allocation4 + $0x48] sm:$0xff]
    %v313 = vld [vmem:[#allocation4 + $0x50] sm:$0xff]
    %v314 = vld [vmem:[#allocation4 + $0x58] sm:$0xff]
    %v315 = vld [vmem:[#allocation4 + $0x60] sm:$0xff]
    %v316 = vld [vmem:[#allocation4 + $0x68] sm:$0xff]
    %v317 = vld [vmem:[#allocation4 + $0x70] sm:$0xff]
    %v318 = vld [vmem:[#allocation4 + $0x78] sm:$0xff]
    %v319 = vld [vmem:[#allocation4 + $0x80] sm:$0xff]
    %v320 = vld [vmem:[#allocation4 + $0x88] sm:$0xff]
    %v321 = vld [vmem:[#allocation4 + $0x90] sm:$0xff]
    %v322 = vld [vmem:[#allocation4 + $0x98] sm:$0xff]
    %v323 = vld [vmem:[#allocation4 + $0xa0] sm:$0xff]
    %v324 = vld [vmem:[#allocation4 + $0xa8] sm:$0xff]
    %v325 = vld [vmem:[#allocation4 + $0xb0] sm:$0xff]
    %v326 = vld [vmem:[#allocation4 + $0xb8] sm:$0xff]
    %v327 = vld [vmem:[#allocation4 + $0xc0] sm:$0xff]
    %v328 = vld [vmem:[#allocation4 + $0xc8] sm:$0xff]
    %v329 = vld [vmem:[#allocation4 + $0xd0] sm:$0xff]
    %v330 = vld [vmem:[#allocation4 + $0xd8] sm:$0xff]
    %v331 = vld [vmem:[#allocation4 + $0xe0] sm:$0xff]
    %v332 = vld [vmem:[#allocation4 + $0xe8] sm:$0xff]
    %v333 = vld [vmem:[#allocation4 + $0xf0] sm:$0xff]
    %v334 = vld [vmem:[#allocation4 + $0xf8] sm:$0xff]
    %v335 = vld [vmem:[#allocation4 + $0x100] sm:$0xff]
    %v336 = vld [vmem:[#allocation4 + $0x108] sm:$0xff]
    %v337 = vld [vmem:[#allocation4 + $0x110] sm:$0xff]
    %v338 = vld [vmem:[#allocation4 + $0x118] sm:$0xff]
    %v339 = vld [vmem:[#allocation4 + $0x120] sm:$0xff]
    %v340 = vld [vmem:[#allocation4 + $0x128] sm:$0xff]
    %v341 = vld [vmem:[#allocation4 + $0x130] sm:$0xff]
    %v342 = vld [vmem:[#allocation4 + $0x138] sm:$0xff]
    %v343 = vld [vmem:[#allocation4 + $0x140] sm:$0xff]
    %v344 = vld [vmem:[#allocation4 + $0x148] sm:$0xff]
    %v345 = vld [vmem:[#allocation4 + $0x150] sm:$0xff]
    %v346 = vld [vmem:[#allocation4 + $0x158] sm:$0xff]
    %v347 = vld [vmem:[#allocation4 + $0x160] sm:$0xff]
    %v348 = vld [vmem:[#allocation4 + $0x168] sm:$0xff]
    %v349 = vld [vmem:[#allocation4 + $0x170] sm:$0xff]
    %v350 = vld [vmem:[#allocation4 + $0x178] sm:$0xff]
    %v351 = vld [vmem:[#allocation4 + $0x180] sm:$0xff]
    %v352 = vld [vmem:[#allocation4 + $0x188] sm:$0xff]
    %v353 = vld [vmem:[#allocation4 + $0x190] sm:$0xff]
    %v354 = vld [vmem:[#allocation4 + $0x198] sm:$0xff]
    %v355 = vld [vmem:[#allocation4 + $0x1a0] sm:$0xff]
    %v356 = vld [vmem:[#allocation4 + $0x1a8] sm:$0xff]
    %v357 = vld [vmem:[#allocation4 + $0x1b0] sm:$0xff]
    %v358 = vld [vmem:[#allocation4 + $0x1b8] sm:$0xff]
    %v359 = vld [vmem:[#allocation4 + $0x1c0] sm:$0xff]
    %v360 = vld [vmem:[#allocation4 + $0x1c8] sm:$0xff]
    %v361 = vld [vmem:[#allocation4 + $0x1d0] sm:$0xff]
    %v362 = vld [vmem:[#allocation4 + $0x1d8] sm:$0xff]
    %v363 = vld [vmem:[#allocation4 + $0x1e0] sm:$0xff]
    %v364 = vld [vmem:[#allocation4 + $0x1e8] sm:$0xff]
    %v365 = vld [vmem:[#allocation4 + $0x1f0] sm:$0xff]
    %v366 = vld [vmem:[#allocation4 + $0x1f8] sm:$0xff]
    %367 = vmatpush.msra.mxu0 %v363
    %368 = vmatpush.msra.mxu0 %v359
    %369 = vmatpush.msra.mxu0 %v355
    %370 = vmatpush.msra.mxu0 %v351
    %371 = vmatpush.msra.mxu0 %v347
    %372 = vmatpush.msra.mxu0 %v343
    %373 = vmatpush.msra.mxu0 %v339
    %374 = vmatpush.msra.mxu0 %v335
    %375 = vmatpush.msra.mxu0 %v331
    %376 = vmatpush.msra.mxu0 %v327
    %377 = vmatpush.msra.mxu0 %v323
    %378 = vmatpush.msra.mxu0 %v319
    %379 = vmatpush.msra.mxu0 %v315
    %380 = vmatpush.msra.mxu0 %v311
    %381 = vmatpush.msra.mxu0 %v307
    %382 = vmatpush.msra.mxu0 %v303
    %383 = vmatmul.f32.gmra.mxu0 0.0
    %v384 = vpop.f32.mrf.mxu0
    %v385 = vadd.f32 %v241, %v384
    %386 = vdwg.mxu0
    %387 = vmatpush.msra.mxu0 %v364
    %388 = vmatpush.msra.mxu0 %v360
    %389 = vmatpush.msra.mxu0 %v356
    %390 = vmatpush.msra.mxu0 %v352
    %391 = vmatpush.msra.mxu0 %v348
    %392 = vmatpush.msra.mxu0 %v344
    %393 = vmatpush.msra.mxu0 %v340
    %394 = vmatpush.msra.mxu0 %v336
    %395 = vmatpush.msra.mxu0 %v332
    %396 = vmatpush.msra.mxu0 %v328
    %397 = vmatpush.msra.mxu0 %v324
    %398 = vmatpush.msra.mxu0 %v320
    %399 = vmatpush.msra.mxu0 %v316
    %400 = vmatpush.msra.mxu0 %v312
    %401 = vmatpush.msra.mxu0 %v308
    %402 = vmatpush.msra.mxu0 %v304
    %403 = vmatmul.f32.gmra.mxu0 0.0
    %v404 = vpop.f32.mrf.mxu0
    %v405 = vadd.f32 %v261, %v404
    %406 = vdwg.mxu0
    %407 = vmatpush.msra.mxu0 %v365
    %408 = vmatpush.msra.mxu0 %v361
    %409 = vmatpush.msra.mxu0 %v357
    %410 = vmatpush.msra.mxu0 %v353
    %411 = vmatpush.msra.mxu0 %v349
    %412 = vmatpush.msra.mxu0 %v345
    %413 = vmatpush.msra.mxu0 %v341
    %414 = vmatpush.msra.mxu0 %v337
    %415 = vmatpush.msra.mxu0 %v333
    %416 = vmatpush.msra.mxu0 %v329
    %417 = vmatpush.msra.mxu0 %v325
    %418 = vmatpush.msra.mxu0 %v321
    %419 = vmatpush.msra.mxu0 %v317
    %420 = vmatpush.msra.mxu0 %v313
    %421 = vmatpush.msra.mxu0 %v309
    %422 = vmatpush.msra.mxu0 %v305
    %423 = vmatmul.f32.gmra.mxu0 0.0
    %v424 = vpop.f32.mrf.mxu0
    %v425 = vadd.f32 %v281, %v424
    %426 = vdwg.mxu0
    %427 = vmatpush.msra.mxu0 %v366
    %428 = vmatpush.msra.mxu0 %v362
    %429 = vmatpush.msra.mxu0 %v358
    %430 = vmatpush.msra.mxu0 %v354
    %431 = vmatpush.msra.mxu0 %v350
    %432 = vmatpush.msra.mxu0 %v346
    %433 = vmatpush.msra.mxu0 %v342
    %434 = vmatpush.msra.mxu0 %v338
    %435 = vmatpush.msra.mxu0 %v334
    %436 = vmatpush.msra.mxu0 %v330
    %437 = vmatpush.msra.mxu0 %v326
    %438 = vmatpush.msra.mxu0 %v322
    %439 = vmatpush.msra.mxu0 %v318
    %440 = vmatpush.msra.mxu0 %v314
    %441 = vmatpush.msra.mxu0 %v310
    %442 = vmatpush.msra.mxu0 %v306
    %443 = vmatmul.f32.gmra.mxu0 0.0
    %v444 = vpop.f32.mrf.mxu0
    %v445 = vadd.f32 %v301, %v444
    %446 = vdwg.mxu0
    %v447 = vxor.u32 %v385, 2147483648
    %v448 = vxor.u32 %v405, 2147483648
    %v449 = vxor.u32 %v445, 2147483648
    %v450 = vmul.f32 %v447, 1.442695
    %v451 = vpow.pop %v450
    %v452 = vmul.f32 %v448, 1.442695
    %v453 = vpow.pop %v452
    %v454 = vmul.f32 %v449, 1.442695
    %v455 = vpow.pop %v454
    %v456 = vadd.f32 %v451, 1.0
    %v457 = vadd.f32 %v453, 1.0
    %v458 = vadd.f32 %v455, 1.0
    %v459 = vrcp.pop %v456
    %v460 = vmul.f32 %v456, %v459
    %v461 = vsub.f32 1.0, %v460
    %v462 = vmul.f32 %v459, %v461
    %v463 = vadd.f32 %v459, %v462
    %vm464 = vweird.f32 %v456
    %vm465 = vweird.f32 %v459
    %vm466 = vmor %vm464, %vm465
    %v467 = vsel %vm466, %v459, %v463
    %v468 = vand.u32 2147483647, %v456
    %vm469 = vcmp.eq.f32.partialorder %v468, 8.507059e+37
    %v470 = vand.u32 %v456, 2147483648
    %v471 = vor.u32 1.1754944e-38, %v470
    %v472 = vsel %vm469, %v471, %v467
    %v473 = vmul.f32 1.0, %v472
    %v474 = vrcp.pop %v457
    %v475 = vmul.f32 %v457, %v474
    %v476 = vsub.f32 1.0, %v475
    %v477 = vmul.f32 %v474, %v476
    %v478 = vadd.f32 %v474, %v477
    %vm479 = vweird.f32 %v457
    %vm480 = vweird.f32 %v474
    %vm481 = vmor %vm479, %vm480
    %v482 = vsel %vm481, %v474, %v478
    %v483 = vand.u32 2147483647, %v457
    %vm484 = vcmp.eq.f32.partialorder %v483, 8.507059e+37
    %v485 = vand.u32 %v457, 2147483648
    %v486 = vor.u32 1.1754944e-38, %v485
    %v487 = vsel %vm484, %v486, %v482
    %v488 = vmul.f32 1.0, %v487
    %v489 = vrcp.pop %v458
    %v490 = vmul.f32 %v458, %v489
    %v491 = vsub.f32 1.0, %v490
    %v492 = vmul.f32 %v489, %v491
    %v493 = vadd.f32 %v489, %v492
    %vm494 = vweird.f32 %v458
    %vm495 = vweird.f32 %v489
    %vm496 = vmor %vm494, %vm495
    %v497 = vsel %vm496, %v489, %v493
    %v498 = vand.u32 2147483647, %v458
    %vm499 = vcmp.eq.f32.partialorder %v498, 8.507059e+37
    %v500 = vand.u32 %v458, 2147483648
    %v501 = vor.u32 1.1754944e-38, %v500
    %v502 = vsel %vm499, %v501, %v497
    %v503 = vmul.f32 1.0, %v502
    %v504 = vtanh.pop %v425
    %v505 = vmul.f32 %v488, 0.0
    %v506 = vmul.f32 %v473, %v504
    %v507 = vadd.f32 %v505, %v506
    %v508 = vtanh.pop %v507
    %v509 = vmul.f32 %v503, %v508
    %v514 = vrot.slane %v241, 1
    %v515 = vrot.slane %v261, 1
    %v516 = vrot.slane %v281, 1
    %v517 = vrot.slane %v301, 1
    %522 = vmatpush.msra.mxu0 %v363
    %523 = vmatpush.msra.mxu0 %v359
    %524 = vmatpush.msra.mxu0 %v355
    %525 = vmatpush.msra.mxu0 %v351
    %526 = vmatpush.msra.mxu0 %v347
    %527 = vmatpush.msra.mxu0 %v343
    %528 = vmatpush.msra.mxu0 %v339
    %529 = vmatpush.msra.mxu0 %v335
    %530 = vmatpush.msra.mxu0 %v331
    %531 = vmatpush.msra.mxu0 %v327
    %532 = vmatpush.msra.mxu0 %v323
    %533 = vmatpush.msra.mxu0 %v319
    %534 = vmatpush.msra.mxu0 %v315
    %535 = vmatpush.msra.mxu0 %v311
    %536 = vmatpush.msra.mxu0 %v307
    %537 = vmatpush.msra.mxu0 %v303
    %538 = vmatmul.f32.gmra.mxu0 %v509
    %v539 = vpop.f32.mrf.mxu0
    %v540 = vadd.f32 %v514, %v539
    %541 = vdwg.mxu0
    %542 = vmatpush.msra.mxu0 %v364
    %543 = vmatpush.msra.mxu0 %v360
    %544 = vmatpush.msra.mxu0 %v356
    %545 = vmatpush.msra.mxu0 %v352
    %546 = vmatpush.msra.mxu0 %v348
    %547 = vmatpush.msra.mxu0 %v344
    %548 = vmatpush.msra.mxu0 %v340
    %549 = vmatpush.msra.mxu0 %v336
    %550 = vmatpush.msra.mxu0 %v332
    %551 = vmatpush.msra.mxu0 %v328
    %552 = vmatpush.msra.mxu0 %v324
    %553 = vmatpush.msra.mxu0 %v320
    %554 = vmatpush.msra.mxu0 %v316
    %555 = vmatpush.msra.mxu0 %v312
    %556 = vmatpush.msra.mxu0 %v308
    %557 = vmatpush.msra.mxu0 %v304
    %558 = vmatmul.f32.gmra.mxu0 %v509
    %v559 = vpop.f32.mrf.mxu0
    %v560 = vadd.f32 %v515, %v559
    %561 = vdwg.mxu0
    %562 = vmatpush.msra.mxu0 %v365
    %563 = vmatpush.msra.mxu0 %v361
    %564 = vmatpush.msra.mxu0 %v357
    %565 = vmatpush.msra.mxu0 %v353
    %566 = vmatpush.msra.mxu0 %v349
    %567 = vmatpush.msra.mxu0 %v345
    %568 = vmatpush.msra.mxu0 %v341
    %569 = vmatpush.msra.mxu0 %v337
    %570 = vmatpush.msra.mxu0 %v333
    %571 = vmatpush.msra.mxu0 %v329
    %572 = vmatpush.msra.mxu0 %v325
    %573 = vmatpush.msra.mxu0 %v321
    %574 = vmatpush.msra.mxu0 %v317
    %575 = vmatpush.msra.mxu0 %v313
    %576 = vmatpush.msra.mxu0 %v309
    %577 = vmatpush.msra.mxu0 %v305
    %578 = vmatmul.f32.gmra.mxu0 %v509
    %v579 = vpop.f32.mrf.mxu0
    %v580 = vadd.f32 %v516, %v579
    %581 = vdwg.mxu0
    %582 = vmatpush.msra.mxu0 %v366
    %583 = vmatpush.msra.mxu0 %v362
    %584 = vmatpush.msra.mxu0 %v358
    %585 = vmatpush.msra.mxu0 %v354
    %586 = vmatpush.msra.mxu0 %v350
    %587 = vmatpush.msra.mxu0 %v346
    %588 = vmatpush.msra.mxu0 %v342
    %589 = vmatpush.msra.mxu0 %v338
    %590 = vmatpush.msra.mxu0 %v334
    %591 = vmatpush.msra.mxu0 %v330
    %592 = vmatpush.msra.mxu0 %v326
    %593 = vmatpush.msra.mxu0 %v322
    %594 = vmatpush.msra.mxu0 %v318
    %595 = vmatpush.msra.mxu0 %v314
    %596 = vmatpush.msra.mxu0 %v310
    %597 = vmatpush.msra.mxu0 %v306
    %598 = vmatmul.f32.gmra.mxu0 %v509
    %v599 = vpop.f32.mrf.mxu0
    %v600 = vadd.f32 %v517, %v599
    %601 = vdwg.mxu0
    %v602 = vxor.u32 %v540, 2147483648
    %v603 = vxor.u32 %v560, 2147483648
    %v604 = vxor.u32 %v600, 2147483648
    %v605 = vmul.f32 %v602, 1.442695
    %v606 = vpow.pop %v605
    %v607 = vmul.f32 %v603, 1.442695
    %v608 = vpow.pop %v607
    %v609 = vmul.f32 %v604, 1.442695
    %v610 = vpow.pop %v609
    %v611 = vadd.f32 %v606, 1.0
    %v612 = vadd.f32 %v608, 1.0
    %v613 = vadd.f32 %v610, 1.0
    %v614 = vrcp.pop %v611
    %v615 = vmul.f32 %v611, %v614
    %v616 = vsub.f32 1.0, %v615
    %v617 = vmul.f32 %v614, %v616
    %v618 = vadd.f32 %v614, %v617
    %vm619 = vweird.f32 %v611
    %vm620 = vweird.f32 %v614
    %vm621 = vmor %vm619, %vm620
    %v622 = vsel %vm621, %v614, %v618
    %v623 = vand.u32 2147483647, %v611
    %vm624 = vcmp.eq.f32.partialorder %v623, 8.507059e+37
    %v625 = vand.u32 %v611, 2147483648
    %v626 = vor.u32 1.1754944e-38, %v625
    %v627 = vsel %vm624, %v626, %v622
    %v628 = vmul.f32 1.0, %v627
    %v629 = vrcp.pop %v612
    %v630 = vmul.f32 %v612, %v629
    %v631 = vsub.f32 1.0, %v630
    %v632 = vmul.f32 %v629, %v631
    %v633 = vadd.f32 %v629, %v632
    %vm634 = vweird.f32 %v612
    %vm635 = vweird.f32 %v629
    %vm636 = vmor %vm634, %vm635
    %v637 = vsel %vm636, %v629, %v633
    %v638 = vand.u32 2147483647, %v612
    %vm639 = vcmp.eq.f32.partialorder %v638, 8.507059e+37
    %v640 = vand.u32 %v612, 2147483648
    %v641 = vor.u32 1.1754944e-38, %v640
    %v642 = vsel %vm639, %v641, %v637
    %v643 = vmul.f32 1.0, %v642
    %v644 = vrcp.pop %v613
    %v645 = vmul.f32 %v613, %v644
    %v646 = vsub.f32 1.0, %v645
    %v647 = vmul.f32 %v644, %v646
    %v648 = vadd.f32 %v644, %v647
    %vm649 = vweird.f32 %v613
    %vm650 = vweird.f32 %v644
    %vm651 = vmor %vm649, %vm650
    %v652 = vsel %vm651, %v644, %v648
    %v653 = vand.u32 2147483647, %v613
    %vm654 = vcmp.eq.f32.partialorder %v653, 8.507059e+37
    %v655 = vand.u32 %v613, 2147483648
    %v656 = vor.u32 1.1754944e-38, %v655
    %v657 = vsel %vm654, %v656, %v652
    %v658 = vmul.f32 1.0, %v657
    %v659 = vtanh.pop %v580
    %v660 = vmul.f32 %v643, %v507
    %v661 = vmul.f32 %v628, %v659
    %v662 = vadd.f32 %v660, %v661
    %v663 = vtanh.pop %v662
    %v664 = vmul.f32 %v658, %v663
    %v665 = vrot.slane %v241, 2
    %v666 = vrot.slane %v261, 2
    %v667 = vrot.slane %v281, 2
    %v668 = vrot.slane %v301, 2
    %673 = vmatpush.msra.mxu0 %v363
    %674 = vmatpush.msra.mxu0 %v359
    %675 = vmatpush.msra.mxu0 %v355
    %676 = vmatpush.msra.mxu0 %v351
    %677 = vmatpush.msra.mxu0 %v347
    %678 = vmatpush.msra.mxu0 %v343
    %679 = vmatpush.msra.mxu0 %v339
    %680 = vmatpush.msra.mxu0 %v335
    %681 = vmatpush.msra.mxu0 %v331
    %682 = vmatpush.msra.mxu0 %v327
    %683 = vmatpush.msra.mxu0 %v323
    %684 = vmatpush.msra.mxu0 %v319
    %685 = vmatpush.msra.mxu0 %v315
    %686 = vmatpush.msra.mxu0 %v311
    %687 = vmatpush.msra.mxu0 %v307
    %688 = vmatpush.msra.mxu0 %v303
    %689 = vmatmul.f32.gmra.mxu0 %v664
    %v690 = vpop.f32.mrf.mxu0
    %v691 = vadd.f32 %v665, %v690
    %692 = vdwg.mxu0
    %693 = vmatpush.msra.mxu0 %v364
    %694 = vmatpush.msra.mxu0 %v360
    %695 = vmatpush.msra.mxu0 %v356
    %696 = vmatpush.msra.mxu0 %v352
    %697 = vmatpush.msra.mxu0 %v348
    %698 = vmatpush.msra.mxu0 %v344
    %699 = vmatpush.msra.mxu0 %v340
    %700 = vmatpush.msra.mxu0 %v336
    %701 = vmatpush.msra.mxu0 %v332
    %702 = vmatpush.msra.mxu0 %v328
    %703 = vmatpush.msra.mxu0 %v324
    %704 = vmatpush.msra.mxu0 %v320
    %705 = vmatpush.msra.mxu0 %v316
    %706 = vmatpush.msra.mxu0 %v312
    %707 = vmatpush.msra.mxu0 %v308
    %708 = vmatpush.msra.mxu0 %v304
    %709 = vmatmul.f32.gmra.mxu0 %v664
    %v710 = vpop.f32.mrf.mxu0
    %v711 = vadd.f32 %v666, %v710
    %712 = vdwg.mxu0
    %713 = vmatpush.msra.mxu0 %v365
    %714 = vmatpush.msra.mxu0 %v361
    %715 = vmatpush.msra.mxu0 %v357
    %716 = vmatpush.msra.mxu0 %v353
    %717 = vmatpush.msra.mxu0 %v349
    %718 = vmatpush.msra.mxu0 %v345
    %719 = vmatpush.msra.mxu0 %v341
    %720 = vmatpush.msra.mxu0 %v337
    %721 = vmatpush.msra.mxu0 %v333
    %722 = vmatpush.msra.mxu0 %v329
    %723 = vmatpush.msra.mxu0 %v325
    %724 = vmatpush.msra.mxu0 %v321
    %725 = vmatpush.msra.mxu0 %v317
    %726 = vmatpush.msra.mxu0 %v313
    %727 = vmatpush.msra.mxu0 %v309
    %728 = vmatpush.msra.mxu0 %v305
    %729 = vmatmul.f32.gmra.mxu0 %v664
    %v730 = vpop.f32.mrf.mxu0
    %v731 = vadd.f32 %v667, %v730
    %732 = vdwg.mxu0
    %733 = vmatpush.msra.mxu0 %v366
    %734 = vmatpush.msra.mxu0 %v362
    %735 = vmatpush.msra.mxu0 %v358
    %736 = vmatpush.msra.mxu0 %v354
    %737 = vmatpush.msra.mxu0 %v350
    %738 = vmatpush.msra.mxu0 %v346
    %739 = vmatpush.msra.mxu0 %v342
    %740 = vmatpush.msra.mxu0 %v338
    %741 = vmatpush.msra.mxu0 %v334
    %742 = vmatpush.msra.mxu0 %v330
    %743 = vmatpush.msra.mxu0 %v326
    %744 = vmatpush.msra.mxu0 %v322
    %745 = vmatpush.msra.mxu0 %v318
    %746 = vmatpush.msra.mxu0 %v314
    %747 = vmatpush.msra.mxu0 %v310
    %748 = vmatpush.msra.mxu0 %v306
    %749 = vmatmul.f32.gmra.mxu0 %v664
    %v750 = vpop.f32.mrf.mxu0
    %v751 = vadd.f32 %v668, %v750
    %752 = vdwg.mxu0
    %v753 = vxor.u32 %v691, 2147483648
    %v754 = vxor.u32 %v711, 2147483648
    %v755 = vxor.u32 %v751, 2147483648
    %v756 = vmul.f32 %v753, 1.442695
    %v757 = vpow.pop %v756
    %v758 = vmul.f32 %v754, 1.442695
    %v759 = vpow.pop %v758
    %v760 = vmul.f32 %v755, 1.442695
    %v761 = vpow.pop %v760
    %v762 = vadd.f32 %v757, 1.0
    %v763 = vadd.f32 %v759, 1.0
    %v764 = vadd.f32 %v761, 1.0
    %v765 = vrcp.pop %v762
    %v766 = vmul.f32 %v762, %v765
    %v767 = vsub.f32 1.0, %v766
    %v768 = vmul.f32 %v765, %v767
    %v769 = vadd.f32 %v765, %v768
    %vm770 = vweird.f32 %v762
    %vm771 = vweird.f32 %v765
    %vm772 = vmor %vm770, %vm771
    %v773 = vsel %vm772, %v765, %v769
    %v774 = vand.u32 2147483647, %v762
    %vm775 = vcmp.eq.f32.partialorder %v774, 8.507059e+37
    %v776 = vand.u32 %v762, 2147483648
    %v777 = vor.u32 1.1754944e-38, %v776
    %v778 = vsel %vm775, %v777, %v773
    %v779 = vmul.f32 1.0, %v778
    %v780 = vrcp.pop %v763
    %v781 = vmul.f32 %v763, %v780
    %v782 = vsub.f32 1.0, %v781
    %v783 = vmul.f32 %v780, %v782
    %v784 = vadd.f32 %v780, %v783
    %vm785 = vweird.f32 %v763
    %vm786 = vweird.f32 %v780
    %vm787 = vmor %vm785, %vm786
    %v788 = vsel %vm787, %v780, %v784
    %v789 = vand.u32 2147483647, %v763
    %vm790 = vcmp.eq.f32.partialorder %v789, 8.507059e+37
    %v791 = vand.u32 %v763, 2147483648
    %v792 = vor.u32 1.1754944e-38, %v791
    %v793 = vsel %vm790, %v792, %v788
    %v794 = vmul.f32 1.0, %v793
    %v795 = vrcp.pop %v764
    %v796 = vmul.f32 %v764, %v795
    %v797 = vsub.f32 1.0, %v796
    %v798 = vmul.f32 %v795, %v797
    %v799 = vadd.f32 %v795, %v798
    %vm800 = vweird.f32 %v764
    %vm801 = vweird.f32 %v795
    %vm802 = vmor %vm800, %vm801
    %v803 = vsel %vm802, %v795, %v799
    %v804 = vand.u32 2147483647, %v764
    %vm805 = vcmp.eq.f32.partialorder %v804, 8.507059e+37
    %v806 = vand.u32 %v764, 2147483648
    %v807 = vor.u32 1.1754944e-38, %v806
    %v808 = vsel %vm805, %v807, %v803
    %v809 = vmul.f32 1.0, %v808
    %v810 = vtanh.pop %v731
    %v811 = vmul.f32 %v794, %v662
    %v812 = vmul.f32 %v779, %v810
    %v813 = vadd.f32 %v811, %v812
    %v814 = vtanh.pop %v813
    %v815 = vmul.f32 %v809, %v814
    %v816 = vrot.slane %v241, 3
    %v817 = vrot.slane %v261, 3
    %v818 = vrot.slane %v281, 3
    %v819 = vrot.slane %v301, 3
    %824 = vmatpush.msra.mxu0 %v363
    %825 = vmatpush.msra.mxu0 %v359
    %826 = vmatpush.msra.mxu0 %v355
    %827 = vmatpush.msra.mxu0 %v351
    %828 = vmatpush.msra.mxu0 %v347
    %829 = vmatpush.msra.mxu0 %v343
    %830 = vmatpush.msra.mxu0 %v339
    %831 = vmatpush.msra.mxu0 %v335
    %832 = vmatpush.msra.mxu0 %v331
    %833 = vmatpush.msra.mxu0 %v327
    %834 = vmatpush.msra.mxu0 %v323
    %835 = vmatpush.msra.mxu0 %v319
    %836 = vmatpush.msra.mxu0 %v315
    %837 = vmatpush.msra.mxu0 %v311
    %838 = vmatpush.msra.mxu0 %v307
    %839 = vmatpush.msra.mxu0 %v303
    %840 = vmatmul.f32.gmra.mxu0 %v815
    %v841 = vpop.f32.mrf.mxu0
    %v842 = vadd.f32 %v816, %v841
    %843 = vdwg.mxu0
    %844 = vmatpush.msra.mxu0 %v364
    %845 = vmatpush.msra.mxu0 %v360
    %846 = vmatpush.msra.mxu0 %v356
    %847 = vmatpush.msra.mxu0 %v352
    %848 = vmatpush.msra.mxu0 %v348
    %849 = vmatpush.msra.mxu0 %v344
    %850 = vmatpush.msra.mxu0 %v340
    %851 = vmatpush.msra.mxu0 %v336
    %852 = vmatpush.msra.mxu0 %v332
    %853 = vmatpush.msra.mxu0 %v328
    %854 = vmatpush.msra.mxu0 %v324
    %855 = vmatpush.msra.mxu0 %v320
    %856 = vmatpush.msra.mxu0 %v316
    %857 = vmatpush.msra.mxu0 %v312
    %858 = vmatpush.msra.mxu0 %v308
    %859 = vmatpush.msra.mxu0 %v304
    %860 = vmatmul.f32.gmra.mxu0 %v815
    %v861 = vpop.f32.mrf.mxu0
    %v862 = vadd.f32 %v817, %v861
    %863 = vdwg.mxu0
    %864 = vmatpush.msra.mxu0 %v365
    %865 = vmatpush.msra.mxu0 %v361
    %866 = vmatpush.msra.mxu0 %v357
    %867 = vmatpush.msra.mxu0 %v353
    %868 = vmatpush.msra.mxu0 %v349
    %869 = vmatpush.msra.mxu0 %v345
    %870 = vmatpush.msra.mxu0 %v341
    %871 = vmatpush.msra.mxu0 %v337
    %872 = vmatpush.msra.mxu0 %v333
    %873 = vmatpush.msra.mxu0 %v329
    %874 = vmatpush.msra.mxu0 %v325
    %875 = vmatpush.msra.mxu0 %v321
    %876 = vmatpush.msra.mxu0 %v317
    %877 = vmatpush.msra.mxu0 %v313
    %878 = vmatpush.msra.mxu0 %v309
    %879 = vmatpush.msra.mxu0 %v305
    %880 = vmatmul.f32.gmra.mxu0 %v815
    %v881 = vpop.f32.mrf.mxu0
    %v882 = vadd.f32 %v818, %v881
    %883 = vdwg.mxu0
    %884 = vmatpush.msra.mxu0 %v366
    %885 = vmatpush.msra.mxu0 %v362
    %886 = vmatpush.msra.mxu0 %v358
    %887 = vmatpush.msra.mxu0 %v354
    %888 = vmatpush.msra.mxu0 %v350
    %889 = vmatpush.msra.mxu0 %v346
    %890 = vmatpush.msra.mxu0 %v342
    %891 = vmatpush.msra.mxu0 %v338
    %892 = vmatpush.msra.mxu0 %v334
    %893 = vmatpush.msra.mxu0 %v330
    %894 = vmatpush.msra.mxu0 %v326
    %895 = vmatpush.msra.mxu0 %v322
    %896 = vmatpush.msra.mxu0 %v318
    %897 = vmatpush.msra.mxu0 %v314
    %898 = vmatpush.msra.mxu0 %v310
    %899 = vmatpush.msra.mxu0 %v306
    %900 = vmatmul.f32.gmra.mxu0 %v815
    %v901 = vpop.f32.mrf.mxu0
    %v902 = vadd.f32 %v819, %v901
    %903 = vdwg.mxu0
    %v904 = vxor.u32 %v842, 2147483648
    %v905 = vxor.u32 %v862, 2147483648
    %v906 = vxor.u32 %v902, 2147483648
    %v907 = vmul.f32 %v904, 1.442695
    %v908 = vpow.pop %v907
    %v909 = vmul.f32 %v905, 1.442695
    %v910 = vpow.pop %v909
    %v911 = vmul.f32 %v906, 1.442695
    %v912 = vpow.pop %v911
    %v913 = vadd.f32 %v908, 1.0
    %v914 = vadd.f32 %v910, 1.0
    %v915 = vadd.f32 %v912, 1.0
    %v916 = vrcp.pop %v913
    %v917 = vmul.f32 %v913, %v916
    %v918 = vsub.f32 1.0, %v917
    %v919 = vmul.f32 %v916, %v918
    %v920 = vadd.f32 %v916, %v919
    %vm921 = vweird.f32 %v913
    %vm922 = vweird.f32 %v916
    %vm923 = vmor %vm921, %vm922
    %v924 = vsel %vm923, %v916, %v920
    %v925 = vand.u32 2147483647, %v913
    %vm926 = vcmp.eq.f32.partialorder %v925, 8.507059e+37
    %v927 = vand.u32 %v913, 2147483648
    %v928 = vor.u32 1.1754944e-38, %v927
    %v929 = vsel %vm926, %v928, %v924
    %v930 = vmul.f32 1.0, %v929
    %v931 = vrcp.pop %v914
    %v932 = vmul.f32 %v914, %v931
    %v933 = vsub.f32 1.0, %v932
    %v934 = vmul.f32 %v931, %v933
    %v935 = vadd.f32 %v931, %v934
    %vm936 = vweird.f32 %v914
    %vm937 = vweird.f32 %v931
    %vm938 = vmor %vm936, %vm937
    %v939 = vsel %vm938, %v931, %v935
    %v940 = vand.u32 2147483647, %v914
    %vm941 = vcmp.eq.f32.partialorder %v940, 8.507059e+37
    %v942 = vand.u32 %v914, 2147483648
    %v943 = vor.u32 1.1754944e-38, %v942
    %v944 = vsel %vm941, %v943, %v939
    %v945 = vmul.f32 1.0, %v944
    %v946 = vrcp.pop %v915
    %v947 = vmul.f32 %v915, %v946
    %v948 = vsub.f32 1.0, %v947
    %v949 = vmul.f32 %v946, %v948
    %v950 = vadd.f32 %v946, %v949
    %vm951 = vweird.f32 %v915
    %vm952 = vweird.f32 %v946
    %vm953 = vmor %vm951, %vm952
    %v954 = vsel %vm953, %v946, %v950
    %v955 = vand.u32 2147483647, %v915
    %vm956 = vcmp.eq.f32.partialorder %v955, 8.507059e+37
    %v957 = vand.u32 %v915, 2147483648
    %v958 = vor.u32 1.1754944e-38, %v957
    %v959 = vsel %vm956, %v958, %v954
    %v960 = vmul.f32 1.0, %v959
    %v961 = vtanh.pop %v882
    %v962 = vmul.f32 %v945, %v813
    %v963 = vmul.f32 %v930, %v961
    %v964 = vadd.f32 %v962, %v963
    %v965 = vtanh.pop %v964
    %v966 = vmul.f32 %v960, %v965
    %v967 = vrot.slane %v241, 4
    %v968 = vrot.slane %v261, 4
    %v969 = vrot.slane %v281, 4
    %v970 = vrot.slane %v301, 4
    %975 = vmatpush.msra.mxu0 %v363
    %976 = vmatpush.msra.mxu0 %v359
    %977 = vmatpush.msra.mxu0 %v355
    %978 = vmatpush.msra.mxu0 %v351
    %979 = vmatpush.msra.mxu0 %v347
    %980 = vmatpush.msra.mxu0 %v343
    %981 = vmatpush.msra.mxu0 %v339
    %982 = vmatpush.msra.mxu0 %v335
    %983 = vmatpush.msra.mxu0 %v331
    %984 = vmatpush.msra.mxu0 %v327
    %985 = vmatpush.msra.mxu0 %v323
    %986 = vmatpush.msra.mxu0 %v319
    %987 = vmatpush.msra.mxu0 %v315
    %988 = vmatpush.msra.mxu0 %v311
    %989 = vmatpush.msra.mxu0 %v307
    %990 = vmatpush.msra.mxu0 %v303
    %991 = vmatmul.f32.gmra.mxu0 %v966
    %v992 = vpop.f32.mrf.mxu0
    %v993 = vadd.f32 %v967, %v992
    %994 = vdwg.mxu0
    %995 = vmatpush.msra.mxu0 %v364
    %996 = vmatpush.msra.mxu0 %v360
    %997 = vmatpush.msra.mxu0 %v356
    %998 = vmatpush.msra.mxu0 %v352
    %999 = vmatpush.msra.mxu0 %v348
    %1000 = vmatpush.msra.mxu0 %v344
    %1001 = vmatpush.msra.mxu0 %v340
    %1002 = vmatpush.msra.mxu0 %v336
    %1003 = vmatpush.msra.mxu0 %v332
    %1004 = vmatpush.msra.mxu0 %v328
    %1005 = vmatpush.msra.mxu0 %v324
    %1006 = vmatpush.msra.mxu0 %v320
    %1007 = vmatpush.msra.mxu0 %v316
    %1008 = vmatpush.msra.mxu0 %v312
    %1009 = vmatpush.msra.mxu0 %v308
    %1010 = vmatpush.msra.mxu0 %v304
    %1011 = vmatmul.f32.gmra.mxu0 %v966
    %v1012 = vpop.f32.mrf.mxu0
    %v1013 = vadd.f32 %v968, %v1012
    %1014 = vdwg.mxu0
    %1015 = vmatpush.msra.mxu0 %v365
    %1016 = vmatpush.msra.mxu0 %v361
    %1017 = vmatpush.msra.mxu0 %v357
    %1018 = vmatpush.msra.mxu0 %v353
    %1019 = vmatpush.msra.mxu0 %v349
    %1020 = vmatpush.msra.mxu0 %v345
    %1021 = vmatpush.msra.mxu0 %v341
    %1022 = vmatpush.msra.mxu0 %v337
    %1023 = vmatpush.msra.mxu0 %v333
    %1024 = vmatpush.msra.mxu0 %v329
    %1025 = vmatpush.msra.mxu0 %v325
    %1026 = vmatpush.msra.mxu0 %v321
    %1027 = vmatpush.msra.mxu0 %v317
    %1028 = vmatpush.msra.mxu0 %v313
    %1029 = vmatpush.msra.mxu0 %v309
    %1030 = vmatpush.msra.mxu0 %v305
    %1031 = vmatmul.f32.gmra.mxu0 %v966
    %v1032 = vpop.f32.mrf.mxu0
    %v1033 = vadd.f32 %v969, %v1032
    %1034 = vdwg.mxu0
    %1035 = vmatpush.msra.mxu0 %v366
    %1036 = vmatpush.msra.mxu0 %v362
    %1037 = vmatpush.msra.mxu0 %v358
    %1038 = vmatpush.msra.mxu0 %v354
    %1039 = vmatpush.msra.mxu0 %v350
    %1040 = vmatpush.msra.mxu0 %v346
    %1041 = vmatpush.msra.mxu0 %v342
    %1042 = vmatpush.msra.mxu0 %v338
    %1043 = vmatpush.msra.mxu0 %v334
    %1044 = vmatpush.msra.mxu0 %v330
    %1045 = vmatpush.msra.mxu0 %v326
    %1046 = vmatpush.msra.mxu0 %v322
    %1047 = vmatpush.msra.mxu0 %v318
    %1048 = vmatpush.msra.mxu0 %v314
    %1049 = vmatpush.msra.mxu0 %v310
    %1050 = vmatpush.msra.mxu0 %v306
    %1051 = vmatmul.f32.gmra.mxu0 %v966
    %v1052 = vpop.f32.mrf.mxu0
    %v1053 = vadd.f32 %v970, %v1052
    %1054 = vdwg.mxu0
    %v1055 = vxor.u32 %v993, 2147483648
    %v1056 = vxor.u32 %v1013, 2147483648
    %v1057 = vxor.u32 %v1053, 2147483648
    %v1058 = vmul.f32 %v1055, 1.442695
    %v1059 = vpow.pop %v1058
    %v1060 = vmul.f32 %v1056, 1.442695
    %v1061 = vpow.pop %v1060
    %v1062 = vmul.f32 %v1057, 1.442695
    %v1063 = vpow.pop %v1062
    %v1064 = vadd.f32 %v1059, 1.0
    %v1065 = vadd.f32 %v1061, 1.0
    %v1066 = vadd.f32 %v1063, 1.0
    %v1067 = vrcp.pop %v1064
    %v1068 = vmul.f32 %v1064, %v1067
    %v1069 = vsub.f32 1.0, %v1068
    %v1070 = vmul.f32 %v1067, %v1069
    %v1071 = vadd.f32 %v1067, %v1070
    %vm1072 = vweird.f32 %v1064
    %vm1073 = vweird.f32 %v1067
    %vm1074 = vmor %vm1072, %vm1073
    %v1075 = vsel %vm1074, %v1067, %v1071
    %v1076 = vand.u32 2147483647, %v1064
    %vm1077 = vcmp.eq.f32.partialorder %v1076, 8.507059e+37
    %v1078 = vand.u32 %v1064, 2147483648
    %v1079 = vor.u32 1.1754944e-38, %v1078
    %v1080 = vsel %vm1077, %v1079, %v1075
    %v1081 = vmul.f32 1.0, %v1080
    %v1082 = vrcp.pop %v1065
    %v1083 = vmul.f32 %v1065, %v1082
    %v1084 = vsub.f32 1.0, %v1083
    %v1085 = vmul.f32 %v1082, %v1084
    %v1086 = vadd.f32 %v1082, %v1085
    %vm1087 = vweird.f32 %v1065
    %vm1088 = vweird.f32 %v1082
    %vm1089 = vmor %vm1087, %vm1088
    %v1090 = vsel %vm1089, %v1082, %v1086
    %v1091 = vand.u32 2147483647, %v1065
    %vm1092 = vcmp.eq.f32.partialorder %v1091, 8.507059e+37
    %v1093 = vand.u32 %v1065, 2147483648
    %v1094 = vor.u32 1.1754944e-38, %v1093
    %v1095 = vsel %vm1092, %v1094, %v1090
    %v1096 = vmul.f32 1.0, %v1095
    %v1097 = vrcp.pop %v1066
    %v1098 = vmul.f32 %v1066, %v1097
    %v1099 = vsub.f32 1.0, %v1098
    %v1100 = vmul.f32 %v1097, %v1099
    %v1101 = vadd.f32 %v1097, %v1100
    %vm1102 = vweird.f32 %v1066
    %vm1103 = vweird.f32 %v1097
    %vm1104 = vmor %vm1102, %vm1103
    %v1105 = vsel %vm1104, %v1097, %v1101
    %v1106 = vand.u32 2147483647, %v1066
    %vm1107 = vcmp.eq.f32.partialorder %v1106, 8.507059e+37
    %v1108 = vand.u32 %v1066, 2147483648
    %v1109 = vor.u32 1.1754944e-38, %v1108
    %v1110 = vsel %vm1107, %v1109, %v1105
    %v1111 = vmul.f32 1.0, %v1110
    %v1112 = vtanh.pop %v1033
    %v1113 = vmul.f32 %v1096, %v964
    %v1114 = vmul.f32 %v1081, %v1112
    %v1115 = vadd.f32 %v1113, %v1114
    %v1116 = vtanh.pop %v1115
    %v1117 = vmul.f32 %v1111, %v1116
    %v1118 = vrot.slane %v241, 5
    %v1119 = vrot.slane %v261, 5
    %v1120 = vrot.slane %v281, 5
    %v1121 = vrot.slane %v301, 5
    %1126 = vmatpush.msra.mxu0 %v363
    %1127 = vmatpush.msra.mxu0 %v359
    %1128 = vmatpush.msra.mxu0 %v355
    %1129 = vmatpush.msra.mxu0 %v351
    %1130 = vmatpush.msra.mxu0 %v347
    %1131 = vmatpush.msra.mxu0 %v343
    %1132 = vmatpush.msra.mxu0 %v339
    %1133 = vmatpush.msra.mxu0 %v335
    %1134 = vmatpush.msra.mxu0 %v331
    %1135 = vmatpush.msra.mxu0 %v327
    %1136 = vmatpush.msra.mxu0 %v323
    %1137 = vmatpush.msra.mxu0 %v319
    %1138 = vmatpush.msra.mxu0 %v315
    %1139 = vmatpush.msra.mxu0 %v311
    %1140 = vmatpush.msra.mxu0 %v307
    %1141 = vmatpush.msra.mxu0 %v303
    %1142 = vmatmul.f32.gmra.mxu0 %v1117
    %v1143 = vpop.f32.mrf.mxu0
    %v1144 = vadd.f32 %v1118, %v1143
    %1145 = vdwg.mxu0
    %1146 = vmatpush.msra.mxu0 %v364
    %1147 = vmatpush.msra.mxu0 %v360
    %1148 = vmatpush.msra.mxu0 %v356
    %1149 = vmatpush.msra.mxu0 %v352
    %1150 = vmatpush.msra.mxu0 %v348
    %1151 = vmatpush.msra.mxu0 %v344
    %1152 = vmatpush.msra.mxu0 %v340
    %1153 = vmatpush.msra.mxu0 %v336
    %1154 = vmatpush.msra.mxu0 %v332
    %1155 = vmatpush.msra.mxu0 %v328
    %1156 = vmatpush.msra.mxu0 %v324
    %1157 = vmatpush.msra.mxu0 %v320
    %1158 = vmatpush.msra.mxu0 %v316
    %1159 = vmatpush.msra.mxu0 %v312
    %1160 = vmatpush.msra.mxu0 %v308
    %1161 = vmatpush.msra.mxu0 %v304
    %1162 = vmatmul.f32.gmra.mxu0 %v1117
    %v1163 = vpop.f32.mrf.mxu0
    %v1164 = vadd.f32 %v1119, %v1163
    %1165 = vdwg.mxu0
    %1166 = vmatpush.msra.mxu0 %v365
    %1167 = vmatpush.msra.mxu0 %v361
    %1168 = vmatpush.msra.mxu0 %v357
    %1169 = vmatpush.msra.mxu0 %v353
    %1170 = vmatpush.msra.mxu0 %v349
    %1171 = vmatpush.msra.mxu0 %v345
    %1172 = vmatpush.msra.mxu0 %v341
    %1173 = vmatpush.msra.mxu0 %v337
    %1174 = vmatpush.msra.mxu0 %v333
    %1175 = vmatpush.msra.mxu0 %v329
    %1176 = vmatpush.msra.mxu0 %v325
    %1177 = vmatpush.msra.mxu0 %v321
    %1178 = vmatpush.msra.mxu0 %v317
    %1179 = vmatpush.msra.mxu0 %v313
    %1180 = vmatpush.msra.mxu0 %v309
    %1181 = vmatpush.msra.mxu0 %v305
    %1182 = vmatmul.f32.gmra.mxu0 %v1117
    %v1183 = vpop.f32.mrf.mxu0
    %v1184 = vadd.f32 %v1120, %v1183
    %1185 = vdwg.mxu0
    %1186 = vmatpush.msra.mxu0 %v366
    %1187 = vmatpush.msra.mxu0 %v362
    %1188 = vmatpush.msra.mxu0 %v358
    %1189 = vmatpush.msra.mxu0 %v354
    %1190 = vmatpush.msra.mxu0 %v350
    %1191 = vmatpush.msra.mxu0 %v346
    %1192 = vmatpush.msra.mxu0 %v342
    %1193 = vmatpush.msra.mxu0 %v338
    %1194 = vmatpush.msra.mxu0 %v334
    %1195 = vmatpush.msra.mxu0 %v330
    %1196 = vmatpush.msra.mxu0 %v326
    %1197 = vmatpush.msra.mxu0 %v322
    %1198 = vmatpush.msra.mxu0 %v318
    %1199 = vmatpush.msra.mxu0 %v314
    %1200 = vmatpush.msra.mxu0 %v310
    %1201 = vmatpush.msra.mxu0 %v306
    %1202 = vmatmul.f32.gmra.mxu0 %v1117
    %v1203 = vpop.f32.mrf.mxu0
    %v1204 = vadd.f32 %v1121, %v1203
    %1205 = vdwg.mxu0
    %v1206 = vxor.u32 %v1144, 2147483648
    %v1207 = vxor.u32 %v1164, 2147483648
    %v1208 = vxor.u32 %v1204, 2147483648
    %v1209 = vmul.f32 %v1206, 1.442695
    %v1210 = vpow.pop %v1209
    %v1211 = vmul.f32 %v1207, 1.442695
    %v1212 = vpow.pop %v1211
    %v1213 = vmul.f32 %v1208, 1.442695
    %v1214 = vpow.pop %v1213
    %v1215 = vadd.f32 %v1210, 1.0
    %v1216 = vadd.f32 %v1212, 1.0
    %v1217 = vadd.f32 %v1214, 1.0
    %v1218 = vrcp.pop %v1215
    %v1219 = vmul.f32 %v1215, %v1218
    %v1220 = vsub.f32 1.0, %v1219
    %v1221 = vmul.f32 %v1218, %v1220
    %v1222 = vadd.f32 %v1218, %v1221
    %vm1223 = vweird.f32 %v1215
    %vm1224 = vweird.f32 %v1218
    %vm1225 = vmor %vm1223, %vm1224
    %v1226 = vsel %vm1225, %v1218, %v1222
    %v1227 = vand.u32 2147483647, %v1215
    %vm1228 = vcmp.eq.f32.partialorder %v1227, 8.507059e+37
    %v1229 = vand.u32 %v1215, 2147483648
    %v1230 = vor.u32 1.1754944e-38, %v1229
    %v1231 = vsel %vm1228, %v1230, %v1226
    %v1232 = vmul.f32 1.0, %v1231
    %v1233 = vrcp.pop %v1216
    %v1234 = vmul.f32 %v1216, %v1233
    %v1235 = vsub.f32 1.0, %v1234
    %v1236 = vmul.f32 %v1233, %v1235
    %v1237 = vadd.f32 %v1233, %v1236
    %vm1238 = vweird.f32 %v1216
    %vm1239 = vweird.f32 %v1233
    %vm1240 = vmor %vm1238, %vm1239
    %v1241 = vsel %vm1240, %v1233, %v1237
    %v1242 = vand.u32 2147483647, %v1216
    %vm1243 = vcmp.eq.f32.partialorder %v1242, 8.507059e+37
    %v1244 = vand.u32 %v1216, 2147483648
    %v1245 = vor.u32 1.1754944e-38, %v1244
    %v1246 = vsel %vm1243, %v1245, %v1241
    %v1247 = vmul.f32 1.0, %v1246
    %v1248 = vrcp.pop %v1217
    %v1249 = vmul.f32 %v1217, %v1248
    %v1250 = vsub.f32 1.0, %v1249
    %v1251 = vmul.f32 %v1248, %v1250
    %v1252 = vadd.f32 %v1248, %v1251
    %vm1253 = vweird.f32 %v1217
    %vm1254 = vweird.f32 %v1248
    %vm1255 = vmor %vm1253, %vm1254
    %v1256 = vsel %vm1255, %v1248, %v1252
    %v1257 = vand.u32 2147483647, %v1217
    %vm1258 = vcmp.eq.f32.partialorder %v1257, 8.507059e+37
    %v1259 = vand.u32 %v1217, 2147483648
    %v1260 = vor.u32 1.1754944e-38, %v1259
    %v1261 = vsel %vm1258, %v1260, %v1256
    %v1262 = vmul.f32 1.0, %v1261
    %v1263 = vtanh.pop %v1184
    %v1264 = vmul.f32 %v1247, %v1115
    %v1265 = vmul.f32 %v1232, %v1263
    %v1266 = vadd.f32 %v1264, %v1265
    %v1267 = vtanh.pop %v1266
    %v1268 = vmul.f32 %v1262, %v1267
    %v1269 = vrot.slane %v241, 6
    %v1270 = vrot.slane %v261, 6
    %v1271 = vrot.slane %v281, 6
    %v1272 = vrot.slane %v301, 6
    %1277 = vmatpush.msra.mxu0 %v363
    %1278 = vmatpush.msra.mxu0 %v359
    %1279 = vmatpush.msra.mxu0 %v355
    %1280 = vmatpush.msra.mxu0 %v351
    %1281 = vmatpush.msra.mxu0 %v347
    %1282 = vmatpush.msra.mxu0 %v343
    %1283 = vmatpush.msra.mxu0 %v339
    %1284 = vmatpush.msra.mxu0 %v335
    %1285 = vmatpush.msra.mxu0 %v331
    %1286 = vmatpush.msra.mxu0 %v327
    %1287 = vmatpush.msra.mxu0 %v323
    %1288 = vmatpush.msra.mxu0 %v319
    %1289 = vmatpush.msra.mxu0 %v315
    %1290 = vmatpush.msra.mxu0 %v311
    %1291 = vmatpush.msra.mxu0 %v307
    %1292 = vmatpush.msra.mxu0 %v303
    %1293 = vmatmul.f32.gmra.mxu0 %v1268
    %v1294 = vpop.f32.mrf.mxu0
    %v1295 = vadd.f32 %v1269, %v1294
    %1296 = vdwg.mxu0
    %1297 = vmatpush.msra.mxu0 %v364
    %1298 = vmatpush.msra.mxu0 %v360
    %1299 = vmatpush.msra.mxu0 %v356
    %1300 = vmatpush.msra.mxu0 %v352
    %1301 = vmatpush.msra.mxu0 %v348
    %1302 = vmatpush.msra.mxu0 %v344
    %1303 = vmatpush.msra.mxu0 %v340
    %1304 = vmatpush.msra.mxu0 %v336
    %1305 = vmatpush.msra.mxu0 %v332
    %1306 = vmatpush.msra.mxu0 %v328
    %1307 = vmatpush.msra.mxu0 %v324
    %1308 = vmatpush.msra.mxu0 %v320
    %1309 = vmatpush.msra.mxu0 %v316
    %1310 = vmatpush.msra.mxu0 %v312
    %1311 = vmatpush.msra.mxu0 %v308
    %1312 = vmatpush.msra.mxu0 %v304
    %1313 = vmatmul.f32.gmra.mxu0 %v1268
    %v1314 = vpop.f32.mrf.mxu0
    %v1315 = vadd.f32 %v1270, %v1314
    %1316 = vdwg.mxu0
    %1317 = vmatpush.msra.mxu0 %v365
    %1318 = vmatpush.msra.mxu0 %v361
    %1319 = vmatpush.msra.mxu0 %v357
    %1320 = vmatpush.msra.mxu0 %v353
    %1321 = vmatpush.msra.mxu0 %v349
    %1322 = vmatpush.msra.mxu0 %v345
    %1323 = vmatpush.msra.mxu0 %v341
    %1324 = vmatpush.msra.mxu0 %v337
    %1325 = vmatpush.msra.mxu0 %v333
    %1326 = vmatpush.msra.mxu0 %v329
    %1327 = vmatpush.msra.mxu0 %v325
    %1328 = vmatpush.msra.mxu0 %v321
    %1329 = vmatpush.msra.mxu0 %v317
    %1330 = vmatpush.msra.mxu0 %v313
    %1331 = vmatpush.msra.mxu0 %v309
    %1332 = vmatpush.msra.mxu0 %v305
    %1333 = vmatmul.f32.gmra.mxu0 %v1268
    %v1334 = vpop.f32.mrf.mxu0
    %v1335 = vadd.f32 %v1271, %v1334
    %1336 = vdwg.mxu0
    %1337 = vmatpush.msra.mxu0 %v366
    %1338 = vmatpush.msra.mxu0 %v362
    %1339 = vmatpush.msra.mxu0 %v358
    %1340 = vmatpush.msra.mxu0 %v354
    %1341 = vmatpush.msra.mxu0 %v350
    %1342 = vmatpush.msra.mxu0 %v346
    %1343 = vmatpush.msra.mxu0 %v342
    %1344 = vmatpush.msra.mxu0 %v338
    %1345 = vmatpush.msra.mxu0 %v334
    %1346 = vmatpush.msra.mxu0 %v330
    %1347 = vmatpush.msra.mxu0 %v326
    %1348 = vmatpush.msra.mxu0 %v322
    %1349 = vmatpush.msra.mxu0 %v318
    %1350 = vmatpush.msra.mxu0 %v314
    %1351 = vmatpush.msra.mxu0 %v310
    %1352 = vmatpush.msra.mxu0 %v306
    %1353 = vmatmul.f32.gmra.mxu0 %v1268
    %v1354 = vpop.f32.mrf.mxu0
    %v1355 = vadd.f32 %v1272, %v1354
    %1356 = vdwg.mxu0
    %v1357 = vxor.u32 %v1295, 2147483648
    %v1358 = vxor.u32 %v1315, 2147483648
    %v1359 = vxor.u32 %v1355, 2147483648
    %v1360 = vmul.f32 %v1357, 1.442695
    %v1361 = vpow.pop %v1360
    %v1362 = vmul.f32 %v1358, 1.442695
    %v1363 = vpow.pop %v1362
    %v1364 = vmul.f32 %v1359, 1.442695
    %v1365 = vpow.pop %v1364
    %v1366 = vadd.f32 %v1361, 1.0
    %v1367 = vadd.f32 %v1363, 1.0
    %v1368 = vadd.f32 %v1365, 1.0
    %v1369 = vrcp.pop %v1366
    %v1370 = vmul.f32 %v1366, %v1369
    %v1371 = vsub.f32 1.0, %v1370
    %v1372 = vmul.f32 %v1369, %v1371
    %v1373 = vadd.f32 %v1369, %v1372
    %vm1374 = vweird.f32 %v1366
    %vm1375 = vweird.f32 %v1369
    %vm1376 = vmor %vm1374, %vm1375
    %v1377 = vsel %vm1376, %v1369, %v1373
    %v1378 = vand.u32 2147483647, %v1366
    %vm1379 = vcmp.eq.f32.partialorder %v1378, 8.507059e+37
    %v1380 = vand.u32 %v1366, 2147483648
    %v1381 = vor.u32 1.1754944e-38, %v1380
    %v1382 = vsel %vm1379, %v1381, %v1377
    %v1383 = vmul.f32 1.0, %v1382
    %v1384 = vrcp.pop %v1367
    %v1385 = vmul.f32 %v1367, %v1384
    %v1386 = vsub.f32 1.0, %v1385
    %v1387 = vmul.f32 %v1384, %v1386
    %v1388 = vadd.f32 %v1384, %v1387
    %vm1389 = vweird.f32 %v1367
    %vm1390 = vweird.f32 %v1384
    %vm1391 = vmor %vm1389, %vm1390
    %v1392 = vsel %vm1391, %v1384, %v1388
    %v1393 = vand.u32 2147483647, %v1367
    %vm1394 = vcmp.eq.f32.partialorder %v1393, 8.507059e+37
    %v1395 = vand.u32 %v1367, 2147483648
    %v1396 = vor.u32 1.1754944e-38, %v1395
    %v1397 = vsel %vm1394, %v1396, %v1392
    %v1398 = vmul.f32 1.0, %v1397
    %v1399 = vrcp.pop %v1368
    %v1400 = vmul.f32 %v1368, %v1399
    %v1401 = vsub.f32 1.0, %v1400
    %v1402 = vmul.f32 %v1399, %v1401
    %v1403 = vadd.f32 %v1399, %v1402
    %vm1404 = vweird.f32 %v1368
    %vm1405 = vweird.f32 %v1399
    %vm1406 = vmor %vm1404, %vm1405
    %v1407 = vsel %vm1406, %v1399, %v1403
    %v1408 = vand.u32 2147483647, %v1368
    %vm1409 = vcmp.eq.f32.partialorder %v1408, 8.507059e+37
    %v1410 = vand.u32 %v1368, 2147483648
    %v1411 = vor.u32 1.1754944e-38, %v1410
    %v1412 = vsel %vm1409, %v1411, %v1407
    %v1413 = vmul.f32 1.0, %v1412
    %v1414 = vtanh.pop %v1335
    %v1415 = vmul.f32 %v1398, %v1266
    %v1416 = vmul.f32 %v1383, %v1414
    %v1417 = vadd.f32 %v1415, %v1416
    %v1418 = vtanh.pop %v1417
    %v1419 = vmul.f32 %v1413, %v1418
    %v1420 = vrot.slane %v241, 7
    %v1421 = vrot.slane %v261, 7
    %v1422 = vrot.slane %v281, 7
    %v1423 = vrot.slane %v301, 7
    %1428 = vmatpush.msra.mxu0 %v363
    %1429 = vmatpush.msra.mxu0 %v359
    %1430 = vmatpush.msra.mxu0 %v355
    %1431 = vmatpush.msra.mxu0 %v351
    %1432 = vmatpush.msra.mxu0 %v347
    %1433 = vmatpush.msra.mxu0 %v343
    %1434 = vmatpush.msra.mxu0 %v339
    %1435 = vmatpush.msra.mxu0 %v335
    %1436 = vmatpush.msra.mxu0 %v331
    %1437 = vmatpush.msra.mxu0 %v327
    %1438 = vmatpush.msra.mxu0 %v323
    %1439 = vmatpush.msra.mxu0 %v319
    %1440 = vmatpush.msra.mxu0 %v315
    %1441 = vmatpush.msra.mxu0 %v311
    %1442 = vmatpush.msra.mxu0 %v307
    %1443 = vmatpush.msra.mxu0 %v303
    %1444 = vmatmul.f32.gmra.mxu0 %v1419
    %v1445 = vpop.f32.mrf.mxu0
    %v1446 = vadd.f32 %v1420, %v1445
    %1447 = vdwg.mxu0
    %1448 = vmatpush.msra.mxu0 %v364
    %1449 = vmatpush.msra.mxu0 %v360
    %1450 = vmatpush.msra.mxu0 %v356
    %1451 = vmatpush.msra.mxu0 %v352
    %1452 = vmatpush.msra.mxu0 %v348
    %1453 = vmatpush.msra.mxu0 %v344
    %1454 = vmatpush.msra.mxu0 %v340
    %1455 = vmatpush.msra.mxu0 %v336
    %1456 = vmatpush.msra.mxu0 %v332
    %1457 = vmatpush.msra.mxu0 %v328
    %1458 = vmatpush.msra.mxu0 %v324
    %1459 = vmatpush.msra.mxu0 %v320
    %1460 = vmatpush.msra.mxu0 %v316
    %1461 = vmatpush.msra.mxu0 %v312
    %1462 = vmatpush.msra.mxu0 %v308
    %1463 = vmatpush.msra.mxu0 %v304
    %1464 = vmatmul.f32.gmra.mxu0 %v1419
    %v1465 = vpop.f32.mrf.mxu0
    %v1466 = vadd.f32 %v1421, %v1465
    %1467 = vdwg.mxu0
    %1468 = vmatpush.msra.mxu0 %v365
    %1469 = vmatpush.msra.mxu0 %v361
    %1470 = vmatpush.msra.mxu0 %v357
    %1471 = vmatpush.msra.mxu0 %v353
    %1472 = vmatpush.msra.mxu0 %v349
    %1473 = vmatpush.msra.mxu0 %v345
    %1474 = vmatpush.msra.mxu0 %v341
    %1475 = vmatpush.msra.mxu0 %v337
    %1476 = vmatpush.msra.mxu0 %v333
    %1477 = vmatpush.msra.mxu0 %v329
    %1478 = vmatpush.msra.mxu0 %v325
    %1479 = vmatpush.msra.mxu0 %v321
    %1480 = vmatpush.msra.mxu0 %v317
    %1481 = vmatpush.msra.mxu0 %v313
    %1482 = vmatpush.msra.mxu0 %v309
    %1483 = vmatpush.msra.mxu0 %v305
    %1484 = vmatmul.f32.gmra.mxu0 %v1419
    %v1485 = vpop.f32.mrf.mxu0
    %v1486 = vadd.f32 %v1422, %v1485
    %1487 = vdwg.mxu0
    %1488 = vmatpush.msra.mxu0 %v366
    %1489 = vmatpush.msra.mxu0 %v362
    %1490 = vmatpush.msra.mxu0 %v358
    %1491 = vmatpush.msra.mxu0 %v354
    %1492 = vmatpush.msra.mxu0 %v350
    %1493 = vmatpush.msra.mxu0 %v346
    %1494 = vmatpush.msra.mxu0 %v342
    %1495 = vmatpush.msra.mxu0 %v338
    %1496 = vmatpush.msra.mxu0 %v334
    %1497 = vmatpush.msra.mxu0 %v330
    %1498 = vmatpush.msra.mxu0 %v326
    %1499 = vmatpush.msra.mxu0 %v322
    %1500 = vmatpush.msra.mxu0 %v318
    %1501 = vmatpush.msra.mxu0 %v314
    %1502 = vmatpush.msra.mxu0 %v310
    %1503 = vmatpush.msra.mxu0 %v306
    %1504 = vmatmul.f32.gmra.mxu0 %v1419
    %v1505 = vpop.f32.mrf.mxu0
    %v1506 = vadd.f32 %v1423, %v1505
    %1507 = vdwg.mxu0
    %v1508 = vxor.u32 %v1446, 2147483648
    %v1509 = vxor.u32 %v1466, 2147483648
    %v1510 = vxor.u32 %v1506, 2147483648
    %v1511 = vmul.f32 %v1508, 1.442695
    %v1512 = vpow.pop %v1511
    %v1513 = vmul.f32 %v1509, 1.442695
    %v1514 = vpow.pop %v1513
    %v1515 = vmul.f32 %v1510, 1.442695
    %v1516 = vpow.pop %v1515
    %v1517 = vadd.f32 %v1512, 1.0
    %v1518 = vadd.f32 %v1514, 1.0
    %v1519 = vadd.f32 %v1516, 1.0
    %v1520 = vrcp.pop %v1517
    %v1521 = vmul.f32 %v1517, %v1520
    %v1522 = vsub.f32 1.0, %v1521
    %v1523 = vmul.f32 %v1520, %v1522
    %v1524 = vadd.f32 %v1520, %v1523
    %vm1525 = vweird.f32 %v1517
    %vm1526 = vweird.f32 %v1520
    %vm1527 = vmor %vm1525, %vm1526
    %v1528 = vsel %vm1527, %v1520, %v1524
    %v1529 = vand.u32 2147483647, %v1517
    %vm1530 = vcmp.eq.f32.partialorder %v1529, 8.507059e+37
    %v1531 = vand.u32 %v1517, 2147483648
    %v1532 = vor.u32 1.1754944e-38, %v1531
    %v1533 = vsel %vm1530, %v1532, %v1528
    %v1534 = vmul.f32 1.0, %v1533
    %v1535 = vrcp.pop %v1518
    %v1536 = vmul.f32 %v1518, %v1535
    %v1537 = vsub.f32 1.0, %v1536
    %v1538 = vmul.f32 %v1535, %v1537
    %v1539 = vadd.f32 %v1535, %v1538
    %vm1540 = vweird.f32 %v1518
    %vm1541 = vweird.f32 %v1535
    %vm1542 = vmor %vm1540, %vm1541
    %v1543 = vsel %vm1542, %v1535, %v1539
    %v1544 = vand.u32 2147483647, %v1518
    %vm1545 = vcmp.eq.f32.partialorder %v1544, 8.507059e+37
    %v1546 = vand.u32 %v1518, 2147483648
    %v1547 = vor.u32 1.1754944e-38, %v1546
    %v1548 = vsel %vm1545, %v1547, %v1543
    %v1549 = vmul.f32 1.0, %v1548
    %v1550 = vrcp.pop %v1519
    %v1551 = vmul.f32 %v1519, %v1550
    %v1552 = vsub.f32 1.0, %v1551
    %v1553 = vmul.f32 %v1550, %v1552
    %v1554 = vadd.f32 %v1550, %v1553
    %vm1555 = vweird.f32 %v1519
    %vm1556 = vweird.f32 %v1550
    %vm1557 = vmor %vm1555, %vm1556
    %v1558 = vsel %vm1557, %v1550, %v1554
    %v1559 = vand.u32 2147483647, %v1519
    %vm1560 = vcmp.eq.f32.partialorder %v1559, 8.507059e+37
    %v1561 = vand.u32 %v1519, 2147483648
    %v1562 = vor.u32 1.1754944e-38, %v1561
    %v1563 = vsel %vm1560, %v1562, %v1558
    %v1564 = vmul.f32 1.0, %v1563
    %v1565 = vtanh.pop %v1486
    %v1566 = vmul.f32 %v1549, %v1417
    %v1567 = vmul.f32 %v1534, %v1565
    %v1568 = vadd.f32 %v1566, %v1567
    %v1569 = vtanh.pop %v1568
    %v1570 = vmul.f32 %v1564, %v1569
    %v1571 = vmul.f32 %v191, %v134
    %v1572 = vmul.f32 %v1571, %v1570
    %v1573 = vmul.f32 %v1572, %v1572
    %vm1574 = vcmask 253952
    %v1575 = vsel %vm1574, %v1573, 0.0
    %1576 = vadd.xlane.f32.xlu0 %v1575
    %v1577 = vpop.xlane.xlu0 %1576
    %v1578 = vrsqrt.pop %v1577
    %v1579 = vmul.f32 %v1578, %v1577
    %v1580 = vmul.f32 %v1579, %v1578
    %v1581 = vmul.f32 0.5, %v1580
    %v1582 = vsub.f32 1.5, %v1581
    %v1583 = vmul.f32 %v1578, %v1582
    %v1584 = vmul.f32 %v1577, %v1583
    %vm1585 = vcmp.eq.f32.partialorder %v1577, inf
    %v1586 = vsel %vm1585, %v1577, %v1584
    %vm1587 = vcmp.eq.f32.partialorder %v1577, 0.0
    %v1588 = vand.u32 %v1577, 2147483648
    %v1589 = vsel %vm1587, %v1588, %v1586
    %v1590 = vmax.f32 %v1589, 1e-12
    %v1591 = vrcp.pop %v1590
    %v1592 = vmul.f32 %v1590, %v1591
    %v1593 = vsub.f32 1.0, %v1592
    %v1594 = vmul.f32 %v1591, %v1593
    %v1595 = vadd.f32 %v1591, %v1594
    %vm1596 = vweird.f32 %v1590
    %vm1597 = vweird.f32 %v1591
    %vm1598 = vmor %vm1596, %vm1597
    %v1599 = vsel %vm1598, %v1591, %v1595
    %v1600 = vand.u32 2147483647, %v1590
    %vm1601 = vcmp.eq.f32.partialorder %v1600, 8.507059e+37
    %v1602 = vand.u32 %v1590, 2147483648
    %v1603 = vor.u32 1.1754944e-38, %v1602
    %v1604 = vsel %vm1601, %v1603, %v1599
    %v1605 = vmul.f32 %v1572, %v1604
    %v1606 = vld [vmem:[%s21] sm:$0xff]
    %v1607 = vld [vmem:[%s21 + $0x8] sm:$0xff]
    %v1608 = vld [vmem:[%s21 + $0x10] sm:$0xff]
    %v1609 = vld [vmem:[%s21 + $0x18] sm:$0xff]
    %v1610 = vld [vmem:[%s22] sm:$0x1]
    %v1612 = vsel %vm112, %v1605, 0
    %1614 = vmatpush.msra.mxu0 0.0
    %1615 = vmatpush.msra.mxu0 0.0
    %1616 = vmatpush.msra.mxu0 0.0
    %1617 = vmatpush.msra.mxu0 0.0
    %1618 = vmatpush.msra.mxu0 0.0
    %1619 = vmatpush.msra.mxu0 0.0
    %1620 = vmatpush.msra.mxu0 0.0
    %1621 = vmatpush.msra.mxu0 0.0
    %1622 = vmatpush.msra.mxu0 0.0
    %1623 = vmatpush.msra.mxu0 0.0
    %1624 = vmatpush.msra.mxu0 0.0
    %1625 = vmatpush.msra.mxu0 0.0
    %1626 = vmatpush.msra.mxu0 %v1609
    %1627 = vmatpush.msra.mxu0 %v1608
    %1628 = vmatpush.msra.mxu0 %v1607
    %1629 = vmatpush.msra.mxu0 %v1606
    %1630 = vmatmul.f32.gmra.mxu0 %v1612
    %v1631 = vpop.f32.mrf.mxu0
    %v1632 = vadd.f32 %v1610, %v1631
    %1633 = vdwg.mxu0
    %vm1634 = vcmask 57344
    %1635 = vst.msk [vmem:[#allocation7] sm:$0x1] %vm1634, %v1632
    // Predicated region
    $region110: #{_fused_layout_forward.1} parent=1 // pred_check
      _
    $region111: #{_fused_layout_forward.1} parent=1 // pred_check_branch
      %1637 = sbr.rel (0) target = $region113
    $region112: #{_fused_layout_forward.1} parent=1 // pred_region
      %1639 = vsyncadd [#allocation6], 0
      %s1641 = sshll.u32 [#allocation7], 4
      %s1642 = int_to_ptr.vmem [resolvable:$true] %s1641
      %s1643 = sshll.u32 %s26, 4
      %s1644 = int_to_ptr.hbm [resolvable:$true] %s1643
      %1646 = dma.vmem_to_hbm [thread:$0]  %s1642, 16, %s1644, [#allocation6]
    $region113: #{_fused_layout_forward.1} parent=1 // pred_fallthru
      _
    // Predicated region
    $region114: #{_fused_layout_forward.1} parent=1 // pred_check
      _
    $region115: #{_fused_layout_forward.1} parent=1 // pred_check_branch
      %1648 = sbr.rel (0) target = $region117
    $region116: #{_fused_layout_forward.1} parent=1 // pred_region
      %1650 = dma.done [#allocation6], 16
    $region117: #{_fused_layout_forward.1} parent=1 // pred_fallthru
      _
    %1651 = vsyncpa [#allocation5], 1
    %1652 = vsyncpa [#allocation6], 1

</llo_original>
